<compile_context>
chip_gen: v7x
topology: tpu7x:2x2x1
jax: 0.10.0
libtpu: 0.0.40
codegen_flags: <defaults>
</compile_context>

<pallas_src>
import jax
import jax.numpy as jnp
from jax.experimental import pallas as pl
from jax.experimental.pallas import tpu as pltpu


INPUT_SIZE = 4
HIDDEN = 100
HIDDEN_PAD = 128          # lane-aligned padded hidden size
OUTPUT_SIZE = 1

# Host-side gate reorder: PyTorch [i, f, g, o] -> kernel [i, f, o, g]
# (puts the three sigmoid gates contiguous so one EUP call covers them).
_GATE_PERM = (0, 1, 3, 2)


def lstm_kernel(x_ref, wih_ref, whh_ref, b_ref, wlin_ref, blin_ref,
                out_ref, xw_ref):
    # x_ref   : (seq_len, I)     f32
    # wih_ref : (I, 4*HP)        f32   (pre-transposed, gate blocks [i,f,o,g], padded)
    # whh_ref : (HP, 4*HP)       f32
    # b_ref   : (1, 4*HP)        f32   (b_ih + b_hh, padded lanes = 0)
    # wlin_ref: (1, HP)          f32   (padded lanes = 0)
    # blin_ref: (1, 1)           f32
    # xw_ref  : (seq_len, 4*HP)  VMEM scratch (precomputed input projection)
    seq_len = x_ref.shape[0]
    HP = whh_ref.shape[0]

    # --- hoisted input projection: one MXU pass for all timesteps + bias ---
    xw_ref[...] = (jnp.dot(x_ref[...], wih_ref[...],
                           preferred_element_type=jnp.float32)
                   + b_ref[...])

    whh = whh_ref[...]          # resident across the recurrence

    # --- peeled step 0 (h0 = c0 = 0: no recurrent matmul, no forget term) ---
    g0 = xw_ref[pl.ds(0, 1), :]                                  # (1, 4*HP)
    s0 = jax.nn.sigmoid(g0[:, :3 * HP])                          # i, f, o
    c = s0[:, 0 * HP:1 * HP] * jnp.tanh(g0[:, 3 * HP:4 * HP])    # i * g
    h = s0[:, 2 * HP:3 * HP] * jnp.tanh(c)                       # o * tanh(c)

    # --- remaining steps: one (1,HP)@(HP,4HP) MXU matmul per step ---------
    def step(t, carry):
        h, c = carry
        gates = (jnp.dot(h, whh, preferred_element_type=jnp.float32)
                 + xw_ref[pl.ds(t, 1), :])                       # (1, 4*HP)
        sig = jax.nn.sigmoid(gates[:, :3 * HP])                  # i | f | o
        i_g = sig[:, 0 * HP:1 * HP]
        f_g = sig[:, 1 * HP:2 * HP]
        o_g = sig[:, 2 * HP:3 * HP]
        g_g = jnp.tanh(gates[:, 3 * HP:4 * HP])
        c_new = f_g * c + i_g * g_g
        h_new = o_g * jnp.tanh(c_new)
        return (h_new, c_new)

    h, c = jax.lax.fori_loop(1, seq_len, step, (h, c), unroll=True)

    # --- linear head on last hidden state: VPU mul + lane reduction -------
    out_ref[...] = (jnp.sum(h * wlin_ref[...], axis=-1, keepdims=True)
                    + blin_ref[...])


def lstm_forward(x, w_ih, w_hh, b_ih, b_hh, w_lin, b_lin):
    """x: (seq_len, 1, input_size) float32. Returns (output_size,) = last prediction."""
    seq_len = x.shape[0]
    I = x.shape[-1]
    H = w_hh.shape[1]
    HP = HIDDEN_PAD

    x2d = x.reshape(seq_len, I).astype(jnp.float32)

    perm = jnp.array(_GATE_PERM)

    # Reorder gate blocks [i,f,g,o] -> [i,f,o,g], pad each gate block along
    # the 4H axis from H -> HP (zeros), and pad the recurrent input dim
    # H -> HP (zeros).  Zero padding keeps the padded lanes of h/c exactly 0.
    def prep_gate_rows(w):                       # (4H, K) -> (4*HP, K)
        w4 = w.reshape(4, H, w.shape[-1])[perm]
        w4 = jnp.pad(w4, ((0, 0), (0, HP - H), (0, 0)))
        return w4.reshape(4 * HP, w.shape[-1])

    wih_t = prep_gate_rows(w_ih).T                                # (I, 4*HP)
    whh_p = jnp.pad(prep_gate_rows(w_hh), ((0, 0), (0, HP - H)))  # (4*HP, HP)
    whh_t = whh_p.T                                               # (HP, 4*HP)
    b = jnp.pad((b_ih + b_hh).reshape(4, H)[perm],
                ((0, 0), (0, HP - H))).reshape(1, 4 * HP)         # (1, 4*HP)
    wlin_row = jnp.pad(w_lin, ((0, 0), (0, HP - H)))              # (1, HP)
    blin = b_lin.reshape(1, OUTPUT_SIZE)                          # (1, 1)

    out = pl.pallas_call(
        lstm_kernel,
        out_shape=jax.ShapeDtypeStruct((1, OUTPUT_SIZE), jnp.float32),
        in_specs=[pl.BlockSpec(memory_space=pltpu.MemorySpace.VMEM)] * 6,
        out_specs=pl.BlockSpec(memory_space=pltpu.MemorySpace.VMEM),
        scratch_shapes=[
            pltpu.VMEM((seq_len, 4 * HP), jnp.float32),   # precomputed x-proj
        ],
    )(x2d, wih_t, whh_t, b, wlin_row, blin)

    return out.reshape(OUTPUT_SIZE)


def lstm_reference(x, w_ih, w_hh, b_ih, b_hh, w_lin, b_lin):
    """Pure-JAX reference matching PyTorch nn.LSTM semantics (unpadded)."""
    H = w_hh.shape[1]

    def step(carry, x_t):
        h, c = carry
        gates = x_t @ w_ih.T + h @ w_hh.T + b_ih + b_hh
        i = jax.nn.sigmoid(gates[:, 0 * H:1 * H])
        f = jax.nn.sigmoid(gates[:, 1 * H:2 * H])
        g = jnp.tanh(gates[:, 2 * H:3 * H])
        o = jax.nn.sigmoid(gates[:, 3 * H:4 * H])
        c_new = f * c + i * g
        h_new = o * jnp.tanh(c_new)
        return (h_new, c_new), h_new

    h0 = jnp.zeros((1, H), jnp.float32)
    c0 = jnp.zeros((1, H), jnp.float32)
    (_, _), hs = jax.lax.scan(step, (h0, c0), x)   # hs: (seq, 1, H)
    preds = hs[:, 0, :] @ w_lin.T + b_lin          # (seq, 1)
    return preds[-1]


if __name__ == "__main__":
    key = jax.random.PRNGKey(0)
    ks = jax.random.split(key, 8)

    seq_len = 8
    bound = 1.0 / jnp.sqrt(jnp.float32(HIDDEN))

    # Deterministic parameter init (PyTorch-style uniform(-1/sqrt(H), 1/sqrt(H))).
    w_ih = jax.random.uniform(ks[0], (4 * HIDDEN, INPUT_SIZE), jnp.float32, -bound, bound)
    w_hh = jax.random.uniform(ks[1], (4 * HIDDEN, HIDDEN), jnp.float32, -bound, bound)
    b_ih = jax.random.uniform(ks[2], (4 * HIDDEN,), jnp.float32, -bound, bound)
    b_hh = jax.random.uniform(ks[3], (4 * HIDDEN,), jnp.float32, -bound, bound)
    w_lin = jax.random.uniform(ks[4], (OUTPUT_SIZE, HIDDEN), jnp.float32, -bound, bound)
    b_lin = jax.random.uniform(ks[5], (OUTPUT_SIZE,), jnp.float32, -bound, bound)

    # Input sequence: (seq_len, 1, input_size), i.e. input_seq.view(len, 1, -1)
    x = jax.random.normal(ks[6], (seq_len, 1, INPUT_SIZE), jnp.float32)

    out = lstm_forward(x, w_ih, w_hh, b_ih, b_hh, w_lin, b_lin)
    out = jax.block_until_ready(out)

    ref = lstm_reference(x, w_ih, w_hh, b_ih, b_hh, w_lin, b_lin)
    assert out.shape == (OUTPUT_SIZE,)
    assert jnp.allclose(out, ref, atol=2e-5, rtol=2e-5), (out, ref)

    print("KERNEL_OK")
</pallas_src>

<mosaic_0001>
module attributes {stable_mosaic.version = 11 : i64} {
  func.func @lstm_kernel(%arg0: memref<8x4xf32, #tpu.memory_space<vmem>>, %arg1: memref<4x512xf32, #tpu.memory_space<vmem>>, %arg2: memref<128x512xf32, #tpu.memory_space<vmem>>, %arg3: memref<1x512xf32, #tpu.memory_space<vmem>>, %arg4: memref<1x128xf32, #tpu.memory_space<vmem>>, %arg5: memref<1x1xf32, #tpu.memory_space<vmem>>, %arg6: memref<1x1xf32, #tpu.memory_space<vmem>>, %arg7: memref<8x512xf32, #tpu.memory_space<vmem>>) attributes {dimension_semantics = [], scalar_prefetch = 0 : i64, scratch_operands = 1 : i64, tpu.core_type = #tpu.core_type<tc>} {
    %c0 = arith.constant 0 : index
    %c0_0 = arith.constant 0 : index
    %0 = vector.load %arg0[%c0, %c0_0] : memref<8x4xf32, #tpu.memory_space<vmem>>, vector<8x4xf32>
    %c0_1 = arith.constant 0 : index
    %c0_2 = arith.constant 0 : index
    %1 = vector.load %arg1[%c0_1, %c0_2] : memref<4x512xf32, #tpu.memory_space<vmem>>, vector<4x512xf32>
    %cst = arith.constant dense<0.000000e+00> : vector<8x512xf32>
    %2 = tpu.matmul %0, %1, %cst {dimension_numbers = #tpu.dot_dimension_numbers<[1], [0], [0], [1], [0, 0, 1, 1], [], []>} : vector<8x4xf32>, vector<4x512xf32>, vector<8x512xf32> -> vector<8x512xf32>
    %c0_3 = arith.constant 0 : index
    %c0_4 = arith.constant 0 : index
    %3 = vector.load %arg3[%c0_3, %c0_4] : memref<1x512xf32, #tpu.memory_space<vmem>>, vector<1x512xf32>
    %4 = vector.broadcast %3 : vector<1x512xf32> to vector<8x512xf32>
    %5 = arith.addf %2, %4 : vector<8x512xf32>
    %c0_5 = arith.constant 0 : index
    %c0_6 = arith.constant 0 : index
    %6 = vector.load %arg7[%c0_5, %c0_6] : memref<8x512xf32, #tpu.memory_space<vmem>>, vector<8x512xf32>
    tpu.vector_store %arg7[%c0_5, %c0_6], %5 {strides = array<i32>} : memref<8x512xf32, #tpu.memory_space<vmem>>, vector<8x512xf32>,
    %c0_7 = arith.constant 0 : index
    %c0_8 = arith.constant 0 : index
    %7 = vector.load %arg2[%c0_7, %c0_8] : memref<128x512xf32, #tpu.memory_space<vmem>>, vector<128x512xf32>
    %c0_9 = arith.constant 0 : index
    %c0_10 = arith.constant 0 : index
    %8 = vector.load %arg7[%c0_9, %c0_10] : memref<8x512xf32, #tpu.memory_space<vmem>>, vector<1x512xf32>
    %9 = vector.extract_strided_slice %8 {offsets = [0, 0], sizes = [1, 384], strides = [1, 1]} : vector<1x512xf32> to vector<1x384xf32>
    %10 = arith.negf %9 : vector<1x384xf32>
    %11 = math.exp %10 : vector<1x384xf32>
    %cst_11 = arith.constant 1.000000e+00 : f32
    %12 = vector.broadcast %cst_11 : f32 to vector<1x384xf32>
    %13 = arith.addf %12, %11 : vector<1x384xf32>
    %14 = arith.divf %12, %13 : vector<1x384xf32>
    %15 = vector.extract_strided_slice %14 {offsets = [0, 0], sizes = [1, 128], strides = [1, 1]} : vector<1x384xf32> to vector<1x128xf32>
    %16 = vector.extract_strided_slice %8 {offsets = [0, 384], sizes = [1, 128], strides = [1, 1]} : vector<1x512xf32> to vector<1x128xf32>
    %17 = math.tanh %16 : vector<1x128xf32>
    %18 = arith.mulf %15, %17 : vector<1x128xf32>
    %19 = vector.extract_strided_slice %14 {offsets = [0, 256], sizes = [1, 128], strides = [1, 1]} : vector<1x384xf32> to vector<1x128xf32>
    %20 = math.tanh %18 : vector<1x128xf32>
    %21 = arith.mulf %19, %20 : vector<1x128xf32>
    %c1_i32 = arith.constant 1 : i32
    %cst_12 = arith.constant dense<0.000000e+00> : vector<1x512xf32>
    %22 = tpu.matmul %21, %7, %cst_12 {dimension_numbers = #tpu.dot_dimension_numbers<[1], [0], [0], [1], [0, 0, 1, 1], [], []>} : vector<1x128xf32>, vector<128x512xf32>, vector<1x512xf32> -> vector<1x512xf32>
    %23 = arith.index_cast %c1_i32 : i32 to index
    %c0_13 = arith.constant 0 : index
    %24 = vector.load %arg7[%23, %c0_13] : memref<8x512xf32, #tpu.memory_space<vmem>>, vector<1x512xf32>
    %25 = arith.addf %22, %24 : vector<1x512xf32>
    %26 = vector.extract_strided_slice %25 {offsets = [0, 0], sizes = [1, 384], strides = [1, 1]} : vector<1x512xf32> to vector<1x384xf32>
    %27 = arith.negf %26 : vector<1x384xf32>
    %28 = math.exp %27 : vector<1x384xf32>
    %cst_14 = arith.constant 1.000000e+00 : f32
    %29 = vector.broadcast %cst_14 : f32 to vector<1x384xf32>
    %30 = arith.addf %29, %28 : vector<1x384xf32>
    %31 = arith.divf %29, %30 : vector<1x384xf32>
    %32 = vector.extract_strided_slice %31 {offsets = [0, 0], sizes = [1, 128], strides = [1, 1]} : vector<1x384xf32> to vector<1x128xf32>
    %33 = vector.extract_strided_slice %31 {offsets = [0, 128], sizes = [1, 128], strides = [1, 1]} : vector<1x384xf32> to vector<1x128xf32>
    %34 = vector.extract_strided_slice %31 {offsets = [0, 256], sizes = [1, 128], strides = [1, 1]} : vector<1x384xf32> to vector<1x128xf32>
    %35 = vector.extract_strided_slice %25 {offsets = [0, 384], sizes = [1, 128], strides = [1, 1]} : vector<1x512xf32> to vector<1x128xf32>
    %36 = math.tanh %35 : vector<1x128xf32>
    %37 = arith.mulf %33, %18 : vector<1x128xf32>
    %38 = arith.mulf %32, %36 : vector<1x128xf32>
    %39 = arith.addf %37, %38 : vector<1x128xf32>
    %40 = math.tanh %39 : vector<1x128xf32>
    %41 = arith.mulf %34, %40 : vector<1x128xf32>
    %c2_i32 = arith.constant 2 : i32
    %cst_15 = arith.constant dense<0.000000e+00> : vector<1x512xf32>
    %42 = tpu.matmul %41, %7, %cst_15 {dimension_numbers = #tpu.dot_dimension_numbers<[1], [0], [0], [1], [0, 0, 1, 1], [], []>} : vector<1x128xf32>, vector<128x512xf32>, vector<1x512xf32> -> vector<1x512xf32>
    %43 = arith.index_cast %c2_i32 : i32 to index
    %c0_16 = arith.constant 0 : index
    %44 = vector.load %arg7[%43, %c0_16] : memref<8x512xf32, #tpu.memory_space<vmem>>, vector<1x512xf32>
    %45 = arith.addf %42, %44 : vector<1x512xf32>
    %46 = vector.extract_strided_slice %45 {offsets = [0, 0], sizes = [1, 384], strides = [1, 1]} : vector<1x512xf32> to vector<1x384xf32>
    %47 = arith.negf %46 : vector<1x384xf32>
    %48 = math.exp %47 : vector<1x384xf32>
    %cst_17 = arith.constant 1.000000e+00 : f32
    %49 = vector.broadcast %cst_17 : f32 to vector<1x384xf32>
    %50 = arith.addf %49, %48 : vector<1x384xf32>
    %51 = arith.divf %49, %50 : vector<1x384xf32>
    %52 = vector.extract_strided_slice %51 {offsets = [0, 0], sizes = [1, 128], strides = [1, 1]} : vector<1x384xf32> to vector<1x128xf32>
    %53 = vector.extract_strided_slice %51 {offsets = [0, 128], sizes = [1, 128], strides = [1, 1]} : vector<1x384xf32> to vector<1x128xf32>
    %54 = vector.extract_strided_slice %51 {offsets = [0, 256], sizes = [1, 128], strides = [1, 1]} : vector<1x384xf32> to vector<1x128xf32>
    %55 = vector.extract_strided_slice %45 {offsets = [0, 384], sizes = [1, 128], strides = [1, 1]} : vector<1x512xf32> to vector<1x128xf32>
    %56 = math.tanh %55 : vector<1x128xf32>
    %57 = arith.mulf %53, %39 : vector<1x128xf32>
    %58 = arith.mulf %52, %56 : vector<1x128xf32>
    %59 = arith.addf %57, %58 : vector<1x128xf32>
    %60 = math.tanh %59 : vector<1x128xf32>
    %61 = arith.mulf %54, %60 : vector<1x128xf32>
    %c3_i32 = arith.constant 3 : i32
    %cst_18 = arith.constant dense<0.000000e+00> : vector<1x512xf32>
    %62 = tpu.matmul %61, %7, %cst_18 {dimension_numbers = #tpu.dot_dimension_numbers<[1], [0], [0], [1], [0, 0, 1, 1], [], []>} : vector<1x128xf32>, vector<128x512xf32>, vector<1x512xf32> -> vector<1x512xf32>
    %63 = arith.index_cast %c3_i32 : i32 to index
    %c0_19 = arith.constant 0 : index
    %64 = vector.load %arg7[%63, %c0_19] : memref<8x512xf32, #tpu.memory_space<vmem>>, vector<1x512xf32>
    %65 = arith.addf %62, %64 : vector<1x512xf32>
    %66 = vector.extract_strided_slice %65 {offsets = [0, 0], sizes = [1, 384], strides = [1, 1]} : vector<1x512xf32> to vector<1x384xf32>
    %67 = arith.negf %66 : vector<1x384xf32>
    %68 = math.exp %67 : vector<1x384xf32>
    %cst_20 = arith.constant 1.000000e+00 : f32
    %69 = vector.broadcast %cst_20 : f32 to vector<1x384xf32>
    %70 = arith.addf %69, %68 : vector<1x384xf32>
    %71 = arith.divf %69, %70 : vector<1x384xf32>
    %72 = vector.extract_strided_slice %71 {offsets = [0, 0], sizes = [1, 128], strides = [1, 1]} : vector<1x384xf32> to vector<1x128xf32>
    %73 = vector.extract_strided_slice %71 {offsets = [0, 128], sizes = [1, 128], strides = [1, 1]} : vector<1x384xf32> to vector<1x128xf32>
    %74 = vector.extract_strided_slice %71 {offsets = [0, 256], sizes = [1, 128], strides = [1, 1]} : vector<1x384xf32> to vector<1x128xf32>
    %75 = vector.extract_strided_slice %65 {offsets = [0, 384], sizes = [1, 128], strides = [1, 1]} : vector<1x512xf32> to vector<1x128xf32>
    %76 = math.tanh %75 : vector<1x128xf32>
    %77 = arith.mulf %73, %59 : vector<1x128xf32>
    %78 = arith.mulf %72, %76 : vector<1x128xf32>
    %79 = arith.addf %77, %78 : vector<1x128xf32>
    %80 = math.tanh %79 : vector<1x128xf32>
    %81 = arith.mulf %74, %80 : vector<1x128xf32>
    %c4_i32 = arith.constant 4 : i32
    %cst_21 = arith.constant dense<0.000000e+00> : vector<1x512xf32>
    %82 = tpu.matmul %81, %7, %cst_21 {dimension_numbers = #tpu.dot_dimension_numbers<[1], [0], [0], [1], [0, 0, 1, 1], [], []>} : vector<1x128xf32>, vector<128x512xf32>, vector<1x512xf32> -> vector<1x512xf32>
    %83 = arith.index_cast %c4_i32 : i32 to index
    %c0_22 = arith.constant 0 : index
    %84 = vector.load %arg7[%83, %c0_22] : memref<8x512xf32, #tpu.memory_space<vmem>>, vector<1x512xf32>
    %85 = arith.addf %82, %84 : vector<1x512xf32>
    %86 = vector.extract_strided_slice %85 {offsets = [0, 0], sizes = [1, 384], strides = [1, 1]} : vector<1x512xf32> to vector<1x384xf32>
    %87 = arith.negf %86 : vector<1x384xf32>
    %88 = math.exp %87 : vector<1x384xf32>
    %cst_23 = arith.constant 1.000000e+00 : f32
    %89 = vector.broadcast %cst_23 : f32 to vector<1x384xf32>
    %90 = arith.addf %89, %88 : vector<1x384xf32>
    %91 = arith.divf %89, %90 : vector<1x384xf32>
    %92 = vector.extract_strided_slice %91 {offsets = [0, 0], sizes = [1, 128], strides = [1, 1]} : vector<1x384xf32> to vector<1x128xf32>
    %93 = vector.extract_strided_slice %91 {offsets = [0, 128], sizes = [1, 128], strides = [1, 1]} : vector<1x384xf32> to vector<1x128xf32>
    %94 = vector.extract_strided_slice %91 {offsets = [0, 256], sizes = [1, 128], strides = [1, 1]} : vector<1x384xf32> to vector<1x128xf32>
    %95 = vector.extract_strided_slice %85 {offsets = [0, 384], sizes = [1, 128], strides = [1, 1]} : vector<1x512xf32> to vector<1x128xf32>
    %96 = math.tanh %95 : vector<1x128xf32>
    %97 = arith.mulf %93, %79 : vector<1x128xf32>
    %98 = arith.mulf %92, %96 : vector<1x128xf32>
    %99 = arith.addf %97, %98 : vector<1x128xf32>
    %100 = math.tanh %99 : vector<1x128xf32>
    %101 = arith.mulf %94, %100 : vector<1x128xf32>
    %c5_i32 = arith.constant 5 : i32
    %cst_24 = arith.constant dense<0.000000e+00> : vector<1x512xf32>
    %102 = tpu.matmul %101, %7, %cst_24 {dimension_numbers = #tpu.dot_dimension_numbers<[1], [0], [0], [1], [0, 0, 1, 1], [], []>} : vector<1x128xf32>, vector<128x512xf32>, vector<1x512xf32> -> vector<1x512xf32>
    %103 = arith.index_cast %c5_i32 : i32 to index
    %c0_25 = arith.constant 0 : index
    %104 = vector.load %arg7[%103, %c0_25] : memref<8x512xf32, #tpu.memory_space<vmem>>, vector<1x512xf32>
    %105 = arith.addf %102, %104 : vector<1x512xf32>
    %106 = vector.extract_strided_slice %105 {offsets = [0, 0], sizes = [1, 384], strides = [1, 1]} : vector<1x512xf32> to vector<1x384xf32>
    %107 = arith.negf %106 : vector<1x384xf32>
    %108 = math.exp %107 : vector<1x384xf32>
    %cst_26 = arith.constant 1.000000e+00 : f32
    %109 = vector.broadcast %cst_26 : f32 to vector<1x384xf32>
    %110 = arith.addf %109, %108 : vector<1x384xf32>
    %111 = arith.divf %109, %110 : vector<1x384xf32>
    %112 = vector.extract_strided_slice %111 {offsets = [0, 0], sizes = [1, 128], strides = [1, 1]} : vector<1x384xf32> to vector<1x128xf32>
    %113 = vector.extract_strided_slice %111 {offsets = [0, 128], sizes = [1, 128], strides = [1, 1]} : vector<1x384xf32> to vector<1x128xf32>
    %114 = vector.extract_strided_slice %111 {offsets = [0, 256], sizes = [1, 128], strides = [1, 1]} : vector<1x384xf32> to vector<1x128xf32>
    %115 = vector.extract_strided_slice %105 {offsets = [0, 384], sizes = [1, 128], strides = [1, 1]} : vector<1x512xf32> to vector<1x128xf32>
    %116 = math.tanh %115 : vector<1x128xf32>
    %117 = arith.mulf %113, %99 : vector<1x128xf32>
    %118 = arith.mulf %112, %116 : vector<1x128xf32>
    %119 = arith.addf %117, %118 : vector<1x128xf32>
    %120 = math.tanh %119 : vector<1x128xf32>
    %121 = arith.mulf %114, %120 : vector<1x128xf32>
    %c6_i32 = arith.constant 6 : i32
    %cst_27 = arith.constant dense<0.000000e+00> : vector<1x512xf32>
    %122 = tpu.matmul %121, %7, %cst_27 {dimension_numbers = #tpu.dot_dimension_numbers<[1], [0], [0], [1], [0, 0, 1, 1], [], []>} : vector<1x128xf32>, vector<128x512xf32>, vector<1x512xf32> -> vector<1x512xf32>
    %123 = arith.index_cast %c6_i32 : i32 to index
    %c0_28 = arith.constant 0 : index
    %124 = vector.load %arg7[%123, %c0_28] : memref<8x512xf32, #tpu.memory_space<vmem>>, vector<1x512xf32>
    %125 = arith.addf %122, %124 : vector<1x512xf32>
    %126 = vector.extract_strided_slice %125 {offsets = [0, 0], sizes = [1, 384], strides = [1, 1]} : vector<1x512xf32> to vector<1x384xf32>
    %127 = arith.negf %126 : vector<1x384xf32>
    %128 = math.exp %127 : vector<1x384xf32>
    %cst_29 = arith.constant 1.000000e+00 : f32
    %129 = vector.broadcast %cst_29 : f32 to vector<1x384xf32>
    %130 = arith.addf %129, %128 : vector<1x384xf32>
    %131 = arith.divf %129, %130 : vector<1x384xf32>
    %132 = vector.extract_strided_slice %131 {offsets = [0, 0], sizes = [1, 128], strides = [1, 1]} : vector<1x384xf32> to vector<1x128xf32>
    %133 = vector.extract_strided_slice %131 {offsets = [0, 128], sizes = [1, 128], strides = [1, 1]} : vector<1x384xf32> to vector<1x128xf32>
    %134 = vector.extract_strided_slice %131 {offsets = [0, 256], sizes = [1, 128], strides = [1, 1]} : vector<1x384xf32> to vector<1x128xf32>
    %135 = vector.extract_strided_slice %125 {offsets = [0, 384], sizes = [1, 128], strides = [1, 1]} : vector<1x512xf32> to vector<1x128xf32>
    %136 = math.tanh %135 : vector<1x128xf32>
    %137 = arith.mulf %133, %119 : vector<1x128xf32>
    %138 = arith.mulf %132, %136 : vector<1x128xf32>
    %139 = arith.addf %137, %138 : vector<1x128xf32>
    %140 = math.tanh %139 : vector<1x128xf32>
    %141 = arith.mulf %134, %140 : vector<1x128xf32>
    %c7_i32 = arith.constant 7 : i32
    %cst_30 = arith.constant dense<0.000000e+00> : vector<1x512xf32>
    %142 = tpu.matmul %141, %7, %cst_30 {dimension_numbers = #tpu.dot_dimension_numbers<[1], [0], [0], [1], [0, 0, 1, 1], [], []>} : vector<1x128xf32>, vector<128x512xf32>, vector<1x512xf32> -> vector<1x512xf32>
    %143 = arith.index_cast %c7_i32 : i32 to index
    %c0_31 = arith.constant 0 : index
    %144 = vector.load %arg7[%143, %c0_31] : memref<8x512xf32, #tpu.memory_space<vmem>>, vector<1x512xf32>
    %145 = arith.addf %142, %144 : vector<1x512xf32>
    %146 = vector.extract_strided_slice %145 {offsets = [0, 0], sizes = [1, 384], strides = [1, 1]} : vector<1x512xf32> to vector<1x384xf32>
    %147 = arith.negf %146 : vector<1x384xf32>
    %148 = math.exp %147 : vector<1x384xf32>
    %cst_32 = arith.constant 1.000000e+00 : f32
    %149 = vector.broadcast %cst_32 : f32 to vector<1x384xf32>
    %150 = arith.addf %149, %148 : vector<1x384xf32>
    %151 = arith.divf %149, %150 : vector<1x384xf32>
    %152 = vector.extract_strided_slice %151 {offsets = [0, 0], sizes = [1, 128], strides = [1, 1]} : vector<1x384xf32> to vector<1x128xf32>
    %153 = vector.extract_strided_slice %151 {offsets = [0, 128], sizes = [1, 128], strides = [1, 1]} : vector<1x384xf32> to vector<1x128xf32>
    %154 = vector.extract_strided_slice %151 {offsets = [0, 256], sizes = [1, 128], strides = [1, 1]} : vector<1x384xf32> to vector<1x128xf32>
    %155 = vector.extract_strided_slice %145 {offsets = [0, 384], sizes = [1, 128], strides = [1, 1]} : vector<1x512xf32> to vector<1x128xf32>
    %156 = math.tanh %155 : vector<1x128xf32>
    %157 = arith.mulf %153, %139 : vector<1x128xf32>
    %158 = arith.mulf %152, %156 : vector<1x128xf32>
    %159 = arith.addf %157, %158 : vector<1x128xf32>
    %160 = math.tanh %159 : vector<1x128xf32>
    %161 = arith.mulf %154, %160 : vector<1x128xf32>
    %c7_i32_33 = arith.constant 7 : i32
    %c0_34 = arith.constant 0 : index
    %c0_35 = arith.constant 0 : index
    %162 = vector.load %arg4[%c0_34, %c0_35] : memref<1x128xf32, #tpu.memory_space<vmem>>, vector<1x128xf32>
    %163 = arith.mulf %161, %162 : vector<1x128xf32>
    %cst_36 = arith.constant dense<0.000000e+00> : vector<1xf32>
    %164 = vector.multi_reduction <add>, %163, %cst_36 [1] : vector<1x128xf32> to vector<1xf32>
    %165 = vector.shape_cast %164 : vector<1xf32> to vector<1x1xf32>
    %c0_37 = arith.constant 0 : index
    %c0_38 = arith.constant 0 : index
    %166 = vector.load %arg5[%c0_37, %c0_38] : memref<1x1xf32, #tpu.memory_space<vmem>>, vector<1x1xf32>
    %167 = arith.addf %165, %166 : vector<1x1xf32>
    %c0_39 = arith.constant 0 : index
    %c0_40 = arith.constant 0 : index
    %168 = vector.load %arg6[%c0_39, %c0_40] : memref<1x1xf32, #tpu.memory_space<vmem>>, vector<1x1xf32>
    tpu.vector_store %arg6[%c0_39, %c0_40], %167 {strides = array<i32>} : memref<1x1xf32, #tpu.memory_space<vmem>>, vector<1x1xf32>,
    return
  }
}

</mosaic_0001>

<llo_original>
// kernel: tpu_custom_call.1
$region0: #{tpu_custom_call.1}
  #allocation0 [shape = 'u32[]', space=smem, size = 0x4, offset = 0x4, fixed_abs, tag = 'smem constant byte address 0x4 - core index']
  #allocation1 [shape = 'u32[144,128]{1,0:T(1,128)}', space=vmem, size = 0x12000, scoped, tag = 'internal scratch']
  #allocation2 [shape = 'f32[8,512]{1,0:T(8,128)}', space=vmem, size = 0x4000, scoped, tag = 'scratch operand']
  #allocation3 [shape = 'f32[1,1]{1,0:T(1,128)S(1)}', space=vmem, size = 0x200, scoped, tag = 'scoped memory for tpu_custom_call.1']
  %s0 = inlined_call_operand.vmem [shape: f32[8,4], index: 0, kind: input, shape index: {}]
  %s1 = inlined_call_operand.vmem [shape: f32[4,512], index: 1, kind: input, shape index: {}]
  %s2 = inlined_call_operand.hbm [shape: f32[128,512], index: 2, kind: input, shape index: {}]
  %s3 = inlined_call_operand.vmem [shape: f32[1,512], index: 3, kind: input, shape index: {}]
  %s4 = inlined_call_operand.vmem [shape: f32[1,128], index: 4, kind: input, shape index: {}]
  %s5 = inlined_call_operand.<no memory space> [shape: f32[1,1], index: 5, kind: input, shape index: {}]
  %s6 = inlined_call_operand.hbm [shape: f32[1,1], index: 6, kind: output, shape index: {}]
  %s7 = sld [smem:[#allocation0]]
  $region38: #{tpu_custom_call.1} parent=0
    _
  %s9 = ssub.s32 1, %s7
  %s10 = scalar_select 0, %s9, %s7
  %v11 = vstv %s5
  %12 = vst [vmem:[#allocation3] sm:$0x1] %v11
  $region1: #{tpu_custom_call.1} parent=0
    #allocation4 [shape = 'u8[262144]{0}', space=vmem, size = 0x40000, scoped, tag = 'input window, operand 2, single buffered']
    #allocation5 [shape = 's32[1]{0}', space=sflag, size = 0x4, scoped, tag = 'scoped memory for tpu_custom_call.1']
    #allocation6 [shape = 's32[1]{0}', space=sflag, size = 0x4, scoped, tag = 'scoped memory for tpu_custom_call.1']
    #allocation7 [shape = 'u8[512]{0}', space=vmem, size = 0x400, scoped, tag = 'output window, operand 0, single buffered']
    %13 = vsyncpa [#allocation5], 0
    %14 = vsyncpa [#allocation6], 0
    // Predicated region
    $region2: #{tpu_custom_call.1} parent=1 // pred_check
      _
    $region3: #{tpu_custom_call.1} parent=1 // pred_check_branch
      %16 = sbr.rel (0) target = $region5
    $region4: #{tpu_custom_call.1} parent=1 // pred_region
      _
    $region5: #{tpu_custom_call.1} parent=1 // pred_fallthru
      _
    // Predicated region
    $region6: #{tpu_custom_call.1} parent=1 // pred_check
      _
    $region7: #{tpu_custom_call.1} parent=1 // pred_check_branch
      %18 = sbr.rel (0) target = $region9
    $region8: #{tpu_custom_call.1} parent=1 // pred_region
      _
    $region9: #{tpu_custom_call.1} parent=1 // pred_fallthru
      _
    // Predicated region
    $region10: #{tpu_custom_call.1} parent=1 // pred_check
      _
    $region11: #{tpu_custom_call.1} parent=1 // pred_check_branch
      %20 = sbr.rel (0) target = $region13
    $region12: #{tpu_custom_call.1} parent=1 // pred_region
      %s22 = ssub.s32 8192, 8192
      %23 = vsyncadd [#allocation5], %s22
      %s24 = sshll.u32 [#allocation4], 4
      %s25 = int_to_ptr.vmem [resolvable:$true] %s24
      %30 = dma.hbm_to_vmem [thread:$0]  %s2, 8192, %s25, [#allocation5], 512, 512, 32
    $region13: #{tpu_custom_call.1} parent=1 // pred_fallthru
      _
    // Predicated region
    $region14: #{tpu_custom_call.1} parent=1 // pred_check
      _
    $region15: #{tpu_custom_call.1} parent=1 // pred_check_branch
      %32 = sbr.rel (0) target = $region17
    $region16: #{tpu_custom_call.1} parent=1 // pred_region
      _
    $region17: #{tpu_custom_call.1} parent=1 // pred_fallthru
      _
    // Predicated region
    $region18: #{tpu_custom_call.1} parent=1 // pred_check
      _
    $region19: #{tpu_custom_call.1} parent=1 // pred_check_branch
      %34 = sbr.rel (0) target = $region21
    $region20: #{tpu_custom_call.1} parent=1 // pred_region
      _
    $region21: #{tpu_custom_call.1} parent=1 // pred_fallthru
      _
    // Predicated region
    $region22: #{tpu_custom_call.1} parent=1 // pred_check
      _
    $region23: #{tpu_custom_call.1} parent=1 // pred_check_branch
      %36 = sbr.rel (0) target = $region25
    $region24: #{tpu_custom_call.1} parent=1 // pred_region
      _
    $region25: #{tpu_custom_call.1} parent=1 // pred_fallthru
      _
    // Predicated region
    $region26: #{tpu_custom_call.1} parent=1 // pred_check
      _
    $region27: #{tpu_custom_call.1} parent=1 // pred_check_branch
      %38 = sbr.rel (0) target = $region29
    $region28: #{tpu_custom_call.1} parent=1 // pred_region
      %39 = dma.done [#allocation5], 8192
    $region29: #{tpu_custom_call.1} parent=1 // pred_fallthru
      _
    %v40 = vld [vmem:[%s0] sm:$0xff]
    %v41 = vld [vmem:[%s1] sm:$0xff]
    %v42 = vld [vmem:[%s1 + $0x8] sm:$0xff]
    %v43 = vld [vmem:[%s3] sm:$0xf]
    %v45 = vlaneseq
    %v46 = vshrl.u32 %v45, 7
    %v47 = vsub.s32 0, %v46
    %v48 = vrot.slane %v43, %v47
    %v49 = vlaneseq
    %v50 = vshrl.u32 %v49, 7
    %v51 = vsub.s32 1, %v50
    %v52 = vrot.slane %v43, %v51
    %v53 = vlaneseq
    %v54 = vshrl.u32 %v53, 7
    %v55 = vsub.s32 2, %v54
    %v56 = vrot.slane %v43, %v55
    %v57 = vlaneseq
    %v58 = vshrl.u32 %v57, 7
    %v59 = vsub.s32 3, %v58
    %v60 = vrot.slane %v43, %v59
    %v67 = vcombine.high %v41, %v41
    %v68 = vcombine.high %v42, %v42
    %vm69 = vcmask 31744
    %v71 = vsel %vm69, %v40, 0
    %vm73 = vcmask 1043456
    %v74 = vsel %vm73, %v41, 0
    %v76 = vsel %vm73, %v67, 0
    %v78 = vsel %vm73, %v42, 0
    %v80 = vsel %vm73, %v68, 0
    %82 = vmatprep.subr.mxu0 %v76
    %83 = vmatpush1.msra.mxu0 %v74
    %84 = vmatprep.subr.mxu0 0.0
    %85 = vmatpush1.msra.mxu0 0.0
    %86 = vmatprep.subr.mxu0 0.0
    %87 = vmatpush1.msra.mxu0 0.0
    %88 = vmatprep.subr.mxu0 0.0
    %89 = vmatpush1.msra.mxu0 0.0
    %90 = vmatprep.subr.mxu0 0.0
    %91 = vmatpush1.msra.mxu0 0.0
    %92 = vmatprep.subr.mxu0 0.0
    %93 = vmatpush1.msra.mxu0 0.0
    %94 = vmatprep.subr.mxu0 0.0
    %95 = vmatpush1.msra.mxu0 0.0
    %96 = vmatprep.subr.mxu0 0.0
    %97 = vmatpush1.msra.mxu0 0.0
    %98 = vmatprep.subr.mxu0 0.0
    %99 = vmatpush1.msra.mxu0 0.0
    %100 = vmatprep.subr.mxu0 0.0
    %101 = vmatpush1.msra.mxu0 0.0
    %102 = vmatprep.subr.mxu0 0.0
    %103 = vmatpush1.msra.mxu0 0.0
    %104 = vmatprep.subr.mxu0 0.0
    %105 = vmatpush1.msra.mxu0 0.0
    %106 = vmatprep.subr.mxu0 0.0
    %107 = vmatpush1.msra.mxu0 0.0
    %108 = vmatprep.subr.mxu0 0.0
    %109 = vmatpush1.msra.mxu0 0.0
    %110 = vmatprep.subr.mxu0 0.0
    %111 = vmatpush1.msra.mxu0 0.0
    %112 = vmatprep.subr.mxu0 0.0
    %113 = vmatpush1.msra.mxu0 0.0
    %114 = vmatprep.subr.mxu0 0.0
    %115 = vmatpush1.msra.mxu0 0.0
    %116 = vmatprep.subr.mxu0 0.0
    %117 = vmatpush1.msra.mxu0 0.0
    %118 = vmatprep.subr.mxu0 0.0
    %119 = vmatpush1.msra.mxu0 0.0
    %120 = vmatprep.subr.mxu0 0.0
    %121 = vmatpush1.msra.mxu0 0.0
    %122 = vmatprep.subr.mxu0 0.0
    %123 = vmatpush1.msra.mxu0 0.0
    %124 = vmatprep.subr.mxu0 0.0
    %125 = vmatpush1.msra.mxu0 0.0
    %126 = vmatprep.subr.mxu0 0.0
    %127 = vmatpush1.msra.mxu0 0.0
    %128 = vmatprep.subr.mxu0 0.0
    %129 = vmatpush1.msra.mxu0 0.0
    %130 = vmatprep.subr.mxu0 0.0
    %131 = vmatpush1.msra.mxu0 0.0
    %132 = vmatprep.subr.mxu0 0.0
    %133 = vmatpush1.msra.mxu0 0.0
    %134 = vmatprep.subr.mxu0 0.0
    %135 = vmatpush1.msra.mxu0 0.0
    %136 = vmatprep.subr.mxu0 0.0
    %137 = vmatpush1.msra.mxu0 0.0
    %138 = vmatprep.subr.mxu0 0.0
    %139 = vmatpush1.msra.mxu0 0.0
    %140 = vmatprep.subr.mxu0 0.0
    %141 = vmatpush1.msra.mxu0 0.0
    %142 = vmatprep.subr.mxu0 0.0
    %143 = vmatpush1.msra.mxu0 0.0
    %144 = vmatprep.subr.mxu0 0.0
    %145 = vmatpush1.msra.mxu0 0.0
    %146 = vmatprep.mubr.f32.mxu0 0.0
    %147 = vmatmul.mubr.f32.gmra.mrb[0].mxu0 %v71
    %v148 = vpop.f32.mrb[0].mxu0
    %v149 = vadd.f32 %v48, %v148
    %v150 = vpop.f32.mrb[0].mxu0
    %v151 = vadd.f32 %v52, %v150
    %152 = vdwg.mxu0
    %153 = vmatprep.subr.mxu0 %v80
    %154 = vmatpush1.msra.mxu0 %v78
    %155 = vmatprep.subr.mxu0 0.0
    %156 = vmatpush1.msra.mxu0 0.0
    %157 = vmatprep.subr.mxu0 0.0
    %158 = vmatpush1.msra.mxu0 0.0
    %159 = vmatprep.subr.mxu0 0.0
    %160 = vmatpush1.msra.mxu0 0.0
    %161 = vmatprep.subr.mxu0 0.0
    %162 = vmatpush1.msra.mxu0 0.0
    %163 = vmatprep.subr.mxu0 0.0
    %164 = vmatpush1.msra.mxu0 0.0
    %165 = vmatprep.subr.mxu0 0.0
    %166 = vmatpush1.msra.mxu0 0.0
    %167 = vmatprep.subr.mxu0 0.0
    %168 = vmatpush1.msra.mxu0 0.0
    %169 = vmatprep.subr.mxu0 0.0
    %170 = vmatpush1.msra.mxu0 0.0
    %171 = vmatprep.subr.mxu0 0.0
    %172 = vmatpush1.msra.mxu0 0.0
    %173 = vmatprep.subr.mxu0 0.0
    %174 = vmatpush1.msra.mxu0 0.0
    %175 = vmatprep.subr.mxu0 0.0
    %176 = vmatpush1.msra.mxu0 0.0
    %177 = vmatprep.subr.mxu0 0.0
    %178 = vmatpush1.msra.mxu0 0.0
    %179 = vmatprep.subr.mxu0 0.0
    %180 = vmatpush1.msra.mxu0 0.0
    %181 = vmatprep.subr.mxu0 0.0
    %182 = vmatpush1.msra.mxu0 0.0
    %183 = vmatprep.subr.mxu0 0.0
    %184 = vmatpush1.msra.mxu0 0.0
    %185 = vmatprep.subr.mxu0 0.0
    %186 = vmatpush1.msra.mxu0 0.0
    %187 = vmatprep.subr.mxu0 0.0
    %188 = vmatpush1.msra.mxu0 0.0
    %189 = vmatprep.subr.mxu0 0.0
    %190 = vmatpush1.msra.mxu0 0.0
    %191 = vmatprep.subr.mxu0 0.0
    %192 = vmatpush1.msra.mxu0 0.0
    %193 = vmatprep.subr.mxu0 0.0
    %194 = vmatpush1.msra.mxu0 0.0
    %195 = vmatprep.subr.mxu0 0.0
    %196 = vmatpush1.msra.mxu0 0.0
    %197 = vmatprep.subr.mxu0 0.0
    %198 = vmatpush1.msra.mxu0 0.0
    %199 = vmatprep.subr.mxu0 0.0
    %200 = vmatpush1.msra.mxu0 0.0
    %201 = vmatprep.subr.mxu0 0.0
    %202 = vmatpush1.msra.mxu0 0.0
    %203 = vmatprep.subr.mxu0 0.0
    %204 = vmatpush1.msra.mxu0 0.0
    %205 = vmatprep.subr.mxu0 0.0
    %206 = vmatpush1.msra.mxu0 0.0
    %207 = vmatprep.subr.mxu0 0.0
    %208 = vmatpush1.msra.mxu0 0.0
    %209 = vmatprep.subr.mxu0 0.0
    %210 = vmatpush1.msra.mxu0 0.0
    %211 = vmatprep.subr.mxu0 0.0
    %212 = vmatpush1.msra.mxu0 0.0
    %213 = vmatprep.subr.mxu0 0.0
    %214 = vmatpush1.msra.mxu0 0.0
    %215 = vmatprep.subr.mxu0 0.0
    %216 = vmatpush1.msra.mxu0 0.0
    %217 = vmatprep.mubr.f32.mxu0 0.0
    %218 = vmatmul.mubr.f32.gmra.mrb[0].mxu0 %v71
    %v219 = vpop.f32.mrb[0].mxu0
    %v220 = vadd.f32 %v56, %v219
    %v221 = vpop.f32.mrb[0].mxu0
    %v222 = vadd.f32 %v60, %v221
    %223 = vdwg.mxu0
    %224 = vst [vmem:[#allocation2] sm:$0xff] %v149
    %225 = vst [vmem:[#allocation2 + $0x8] sm:$0xff] %v151
    %226 = vst [vmem:[#allocation2 + $0x10] sm:$0xff] %v220
    %227 = vst [vmem:[#allocation2 + $0x18] sm:$0xff] %v222
    %v228 = vld [vmem:[#allocation4] sm:$0xff]
    %v229 = vld [vmem:[#allocation4 + $0x8] sm:$0xff]
    %v230 = vld [vmem:[#allocation4 + $0x10] sm:$0xff]
    %v231 = vld [vmem:[#allocation4 + $0x18] sm:$0xff]
    %v232 = vld [vmem:[#allocation4 + $0x20] sm:$0xff]
    %v233 = vld [vmem:[#allocation4 + $0x28] sm:$0xff]
    %v234 = vld [vmem:[#allocation4 + $0x30] sm:$0xff]
    %v235 = vld [vmem:[#allocation4 + $0x38] sm:$0xff]
    %v236 = vld [vmem:[#allocation4 + $0x40] sm:$0xff]
    %v237 = vld [vmem:[#allocation4 + $0x48] sm:$0xff]
    %v238 = vld [vmem:[#allocation4 + $0x50] sm:$0xff]
    %v239 = vld [vmem:[#allocation4 + $0x58] sm:$0xff]
    %v240 = vld [vmem:[#allocation4 + $0x60] sm:$0xff]
    %v241 = vld [vmem:[#allocation4 + $0x68] sm:$0xff]
    %v242 = vld [vmem:[#allocation4 + $0x70] sm:$0xff]
    %v243 = vld [vmem:[#allocation4 + $0x78] sm:$0xff]
    %v244 = vld [vmem:[#allocation4 + $0x80] sm:$0xff]
    %v245 = vld [vmem:[#allocation4 + $0x88] sm:$0xff]
    %v246 = vld [vmem:[#allocation4 + $0x90] sm:$0xff]
    %v247 = vld [vmem:[#allocation4 + $0x98] sm:$0xff]
    %v248 = vld [vmem:[#allocation4 + $0xa0] sm:$0xff]
    %v249 = vld [vmem:[#allocation4 + $0xa8] sm:$0xff]
    %v250 = vld [vmem:[#allocation4 + $0xb0] sm:$0xff]
    %v251 = vld [vmem:[#allocation4 + $0xb8] sm:$0xff]
    %v252 = vld [vmem:[#allocation4 + $0xc0] sm:$0xff]
    %v253 = vld [vmem:[#allocation4 + $0xc8] sm:$0xff]
    %v254 = vld [vmem:[#allocation4 + $0xd0] sm:$0xff]
    %v255 = vld [vmem:[#allocation4 + $0xd8] sm:$0xff]
    %v256 = vld [vmem:[#allocation4 + $0xe0] sm:$0xff]
    %v257 = vld [vmem:[#allocation4 + $0xe8] sm:$0xff]
    %v258 = vld [vmem:[#allocation4 + $0xf0] sm:$0xff]
    %v259 = vld [vmem:[#allocation4 + $0xf8] sm:$0xff]
    %v260 = vld [vmem:[#allocation4 + $0x100] sm:$0xff]
    %v261 = vld [vmem:[#allocation4 + $0x108] sm:$0xff]
    %v262 = vld [vmem:[#allocation4 + $0x110] sm:$0xff]
    %v263 = vld [vmem:[#allocation4 + $0x118] sm:$0xff]
    %v264 = vld [vmem:[#allocation4 + $0x120] sm:$0xff]
    %v265 = vld [vmem:[#allocation4 + $0x128] sm:$0xff]
    %v266 = vld [vmem:[#allocation4 + $0x130] sm:$0xff]
    %v267 = vld [vmem:[#allocation4 + $0x138] sm:$0xff]
    %v268 = vld [vmem:[#allocation4 + $0x140] sm:$0xff]
    %v269 = vld [vmem:[#allocation4 + $0x148] sm:$0xff]
    %v270 = vld [vmem:[#allocation4 + $0x150] sm:$0xff]
    %v271 = vld [vmem:[#allocation4 + $0x158] sm:$0xff]
    %v272 = vld [vmem:[#allocation4 + $0x160] sm:$0xff]
    %v273 = vld [vmem:[#allocation4 + $0x168] sm:$0xff]
    %v274 = vld [vmem:[#allocation4 + $0x170] sm:$0xff]
    %v275 = vld [vmem:[#allocation4 + $0x178] sm:$0xff]
    %v276 = vld [vmem:[#allocation4 + $0x180] sm:$0xff]
    %v277 = vld [vmem:[#allocation4 + $0x188] sm:$0xff]
    %v278 = vld [vmem:[#allocation4 + $0x190] sm:$0xff]
    %v279 = vld [vmem:[#allocation4 + $0x198] sm:$0xff]
    %v280 = vld [vmem:[#allocation4 + $0x1a0] sm:$0xff]
    %v281 = vld [vmem:[#allocation4 + $0x1a8] sm:$0xff]
    %v282 = vld [vmem:[#allocation4 + $0x1b0] sm:$0xff]
    %v283 = vld [vmem:[#allocation4 + $0x1b8] sm:$0xff]
    %v284 = vld [vmem:[#allocation4 + $0x1c0] sm:$0xff]
    %v285 = vld [vmem:[#allocation4 + $0x1c8] sm:$0xff]
    %v286 = vld [vmem:[#allocation4 + $0x1d0] sm:$0xff]
    %v287 = vld [vmem:[#allocation4 + $0x1d8] sm:$0xff]
    %v288 = vld [vmem:[#allocation4 + $0x1e0] sm:$0xff]
    %v289 = vld [vmem:[#allocation4 + $0x1e8] sm:$0xff]
    %v290 = vld [vmem:[#allocation4 + $0x1f0] sm:$0xff]
    %v291 = vld [vmem:[#allocation4 + $0x1f8] sm:$0xff]
    %v292 = vld [vmem:[#allocation2] ss:$8 sm:$0xf]
    %v293 = vxor.u32 %v292, 2147483648
    %v294 = vmul.f32 %v293, 1.442695
    %v295 = vpow.pop %v294
    %v296 = vadd.f32 %v295, 1.0
    %v297 = vrcp.pop %v296
    %v298 = vmul.f32 1.0, %v297
    %v300 = vrot.slane %v292, 3
    %v302 = vtanh.pop %v300
    %v303 = vmul.f32 %v298, %v302
    %v304 = vtanh.pop %v303
    %v306 = vrot.slane %v298, 2
    %v308 = vmul.f32 %v306, %v304
    %s309 = scalar_lea.vmem [#allocation2], 1
    %v310 = vld [vmem:[%s309] ss:$8 sm:$0xf]
    %v312 = vlaneseq
    %v313 = vshrl.u32 %v312, 7
    %v314 = vsub.s32 0, %v313
    %v315 = vrot.slane %v310, %v314
    %v316 = vlaneseq
    %v317 = vshrl.u32 %v316, 7
    %v318 = vsub.s32 1, %v317
    %v319 = vrot.slane %v310, %v318
    %v320 = vlaneseq
    %v321 = vshrl.u32 %v320, 7
    %v322 = vsub.s32 2, %v321
    %v323 = vrot.slane %v310, %v322
    %v324 = vlaneseq
    %v325 = vshrl.u32 %v324, 7
    %v326 = vsub.s32 3, %v325
    %v327 = vrot.slane %v310, %v326
    %332 = vmatprep.subr.mxu0 %v229
    %333 = vmatpush1.msra.mxu0 %v228
    %334 = vmatprep.subr.mxu0 %v233
    %335 = vmatpush1.msra.mxu0 %v232
    %336 = vmatprep.subr.mxu0 %v237
    %337 = vmatpush1.msra.mxu0 %v236
    %338 = vmatprep.subr.mxu0 %v241
    %339 = vmatpush1.msra.mxu0 %v240
    %340 = vmatprep.subr.mxu0 %v245
    %341 = vmatpush1.msra.mxu0 %v244
    %342 = vmatprep.subr.mxu0 %v249
    %343 = vmatpush1.msra.mxu0 %v248
    %344 = vmatprep.subr.mxu0 %v253
    %345 = vmatpush1.msra.mxu0 %v252
    %346 = vmatprep.subr.mxu0 %v257
    %347 = vmatpush1.msra.mxu0 %v256
    %348 = vmatprep.subr.mxu0 %v261
    %349 = vmatpush1.msra.mxu0 %v260
    %350 = vmatprep.subr.mxu0 %v265
    %351 = vmatpush1.msra.mxu0 %v264
    %352 = vmatprep.subr.mxu0 %v269
    %353 = vmatpush1.msra.mxu0 %v268
    %354 = vmatprep.subr.mxu0 %v273
    %355 = vmatpush1.msra.mxu0 %v272
    %356 = vmatprep.subr.mxu0 %v277
    %357 = vmatpush1.msra.mxu0 %v276
    %358 = vmatprep.subr.mxu0 %v281
    %359 = vmatpush1.msra.mxu0 %v280
    %360 = vmatprep.subr.mxu0 %v285
    %361 = vmatpush1.msra.mxu0 %v284
    %362 = vmatprep.subr.mxu0 %v289
    %363 = vmatpush1.msra.mxu0 %v288
    %364 = vmatprep.subr.mxu0 0.0
    %365 = vmatpush1.msra.mxu0 0.0
    %366 = vmatprep.subr.mxu0 0.0
    %367 = vmatpush1.msra.mxu0 0.0
    %368 = vmatprep.subr.mxu0 0.0
    %369 = vmatpush1.msra.mxu0 0.0
    %370 = vmatprep.subr.mxu0 0.0
    %371 = vmatpush1.msra.mxu0 0.0
    %372 = vmatprep.subr.mxu0 0.0
    %373 = vmatpush1.msra.mxu0 0.0
    %374 = vmatprep.subr.mxu0 0.0
    %375 = vmatpush1.msra.mxu0 0.0
    %376 = vmatprep.subr.mxu0 0.0
    %377 = vmatpush1.msra.mxu0 0.0
    %378 = vmatprep.subr.mxu0 0.0
    %379 = vmatpush1.msra.mxu0 0.0
    %380 = vmatprep.subr.mxu0 0.0
    %381 = vmatpush1.msra.mxu0 0.0
    %382 = vmatprep.subr.mxu0 0.0
    %383 = vmatpush1.msra.mxu0 0.0
    %384 = vmatprep.subr.mxu0 0.0
    %385 = vmatpush1.msra.mxu0 0.0
    %386 = vmatprep.subr.mxu0 0.0
    %387 = vmatpush1.msra.mxu0 0.0
    %388 = vmatprep.subr.mxu0 0.0
    %389 = vmatpush1.msra.mxu0 0.0
    %390 = vmatprep.subr.mxu0 0.0
    %391 = vmatpush1.msra.mxu0 0.0
    %392 = vmatprep.subr.mxu0 0.0
    %393 = vmatpush1.msra.mxu0 0.0
    %394 = vmatprep.subr.mxu0 0.0
    %395 = vmatpush1.msra.mxu0 0.0
    %396 = vmatprep.mubr.f32.mxu0 0.0
    %397 = vmatmul.mubr.f32.gmra.mrb[0].mxu0 %v308
    %v398 = vpop.f32.mrb[0].mxu0
    %v399 = vadd.f32 %v315, %v398
    %v400 = vpop.f32.mrb[0].mxu0
    %v401 = vadd.f32 %v319, %v400
    %402 = vdwg.mxu0
    %403 = vmatprep.subr.mxu0 %v231
    %404 = vmatpush1.msra.mxu0 %v230
    %405 = vmatprep.subr.mxu0 %v235
    %406 = vmatpush1.msra.mxu0 %v234
    %407 = vmatprep.subr.mxu0 %v239
    %408 = vmatpush1.msra.mxu0 %v238
    %409 = vmatprep.subr.mxu0 %v243
    %410 = vmatpush1.msra.mxu0 %v242
    %411 = vmatprep.subr.mxu0 %v247
    %412 = vmatpush1.msra.mxu0 %v246
    %413 = vmatprep.subr.mxu0 %v251
    %414 = vmatpush1.msra.mxu0 %v250
    %415 = vmatprep.subr.mxu0 %v255
    %416 = vmatpush1.msra.mxu0 %v254
    %417 = vmatprep.subr.mxu0 %v259
    %418 = vmatpush1.msra.mxu0 %v258
    %419 = vmatprep.subr.mxu0 %v263
    %420 = vmatpush1.msra.mxu0 %v262
    %421 = vmatprep.subr.mxu0 %v267
    %422 = vmatpush1.msra.mxu0 %v266
    %423 = vmatprep.subr.mxu0 %v271
    %424 = vmatpush1.msra.mxu0 %v270
    %425 = vmatprep.subr.mxu0 %v275
    %426 = vmatpush1.msra.mxu0 %v274
    %427 = vmatprep.subr.mxu0 %v279
    %428 = vmatpush1.msra.mxu0 %v278
    %429 = vmatprep.subr.mxu0 %v283
    %430 = vmatpush1.msra.mxu0 %v282
    %431 = vmatprep.subr.mxu0 %v287
    %432 = vmatpush1.msra.mxu0 %v286
    %433 = vmatprep.subr.mxu0 %v291
    %434 = vmatpush1.msra.mxu0 %v290
    %435 = vmatprep.subr.mxu0 0.0
    %436 = vmatpush1.msra.mxu0 0.0
    %437 = vmatprep.subr.mxu0 0.0
    %438 = vmatpush1.msra.mxu0 0.0
    %439 = vmatprep.subr.mxu0 0.0
    %440 = vmatpush1.msra.mxu0 0.0
    %441 = vmatprep.subr.mxu0 0.0
    %442 = vmatpush1.msra.mxu0 0.0
    %443 = vmatprep.subr.mxu0 0.0
    %444 = vmatpush1.msra.mxu0 0.0
    %445 = vmatprep.subr.mxu0 0.0
    %446 = vmatpush1.msra.mxu0 0.0
    %447 = vmatprep.subr.mxu0 0.0
    %448 = vmatpush1.msra.mxu0 0.0
    %449 = vmatprep.subr.mxu0 0.0
    %450 = vmatpush1.msra.mxu0 0.0
    %451 = vmatprep.subr.mxu0 0.0
    %452 = vmatpush1.msra.mxu0 0.0
    %453 = vmatprep.subr.mxu0 0.0
    %454 = vmatpush1.msra.mxu0 0.0
    %455 = vmatprep.subr.mxu0 0.0
    %456 = vmatpush1.msra.mxu0 0.0
    %457 = vmatprep.subr.mxu0 0.0
    %458 = vmatpush1.msra.mxu0 0.0
    %459 = vmatprep.subr.mxu0 0.0
    %460 = vmatpush1.msra.mxu0 0.0
    %461 = vmatprep.subr.mxu0 0.0
    %462 = vmatpush1.msra.mxu0 0.0
    %463 = vmatprep.subr.mxu0 0.0
    %464 = vmatpush1.msra.mxu0 0.0
    %465 = vmatprep.subr.mxu0 0.0
    %466 = vmatpush1.msra.mxu0 0.0
    %467 = vmatprep.mubr.f32.mxu0 0.0
    %468 = vmatmul.mubr.f32.gmra.mrb[0].mxu0 %v308
    %v469 = vpop.f32.mrb[0].mxu0
    %v470 = vadd.f32 %v323, %v469
    %v471 = vpop.f32.mrb[0].mxu0
    %v472 = vadd.f32 %v327, %v471
    %473 = vdwg.mxu0
    %v474 = vxor.u32 %v399, 2147483648
    %v475 = vxor.u32 %v401, 2147483648
    %v476 = vxor.u32 %v470, 2147483648
    %v477 = vmul.f32 %v474, 1.442695
    %v478 = vpow.pop %v477
    %v479 = vmul.f32 %v475, 1.442695
    %v480 = vpow.pop %v479
    %v481 = vmul.f32 %v476, 1.442695
    %v482 = vpow.pop %v481
    %v483 = vadd.f32 %v478, 1.0
    %v484 = vadd.f32 %v480, 1.0
    %v485 = vadd.f32 %v482, 1.0
    %v486 = vrcp.pop %v483
    %v487 = vmul.f32 1.0, %v486
    %v488 = vrcp.pop %v484
    %v489 = vmul.f32 1.0, %v488
    %v490 = vrcp.pop %v485
    %v491 = vmul.f32 1.0, %v490
    %v492 = vtanh.pop %v472
    %v493 = vmul.f32 %v489, %v303
    %v494 = vmul.f32 %v487, %v492
    %v495 = vadd.f32 %v493, %v494
    %v496 = vtanh.pop %v495
    %v497 = vmul.f32 %v491, %v496
    %s498 = scalar_lea.vmem [#allocation2], 2
    %v499 = vld [vmem:[%s498] ss:$8 sm:$0xf]
    %v501 = vlaneseq
    %v502 = vshrl.u32 %v501, 7
    %v503 = vsub.s32 0, %v502
    %v504 = vrot.slane %v499, %v503
    %v505 = vlaneseq
    %v506 = vshrl.u32 %v505, 7
    %v507 = vsub.s32 1, %v506
    %v508 = vrot.slane %v499, %v507
    %v509 = vlaneseq
    %v510 = vshrl.u32 %v509, 7
    %v511 = vsub.s32 2, %v510
    %v512 = vrot.slane %v499, %v511
    %v513 = vlaneseq
    %v514 = vshrl.u32 %v513, 7
    %v515 = vsub.s32 3, %v514
    %v516 = vrot.slane %v499, %v515
    %521 = vmatprep.subr.mxu0 %v229
    %522 = vmatpush1.msra.mxu0 %v228
    %523 = vmatprep.subr.mxu0 %v233
    %524 = vmatpush1.msra.mxu0 %v232
    %525 = vmatprep.subr.mxu0 %v237
    %526 = vmatpush1.msra.mxu0 %v236
    %527 = vmatprep.subr.mxu0 %v241
    %528 = vmatpush1.msra.mxu0 %v240
    %529 = vmatprep.subr.mxu0 %v245
    %530 = vmatpush1.msra.mxu0 %v244
    %531 = vmatprep.subr.mxu0 %v249
    %532 = vmatpush1.msra.mxu0 %v248
    %533 = vmatprep.subr.mxu0 %v253
    %534 = vmatpush1.msra.mxu0 %v252
    %535 = vmatprep.subr.mxu0 %v257
    %536 = vmatpush1.msra.mxu0 %v256
    %537 = vmatprep.subr.mxu0 %v261
    %538 = vmatpush1.msra.mxu0 %v260
    %539 = vmatprep.subr.mxu0 %v265
    %540 = vmatpush1.msra.mxu0 %v264
    %541 = vmatprep.subr.mxu0 %v269
    %542 = vmatpush1.msra.mxu0 %v268
    %543 = vmatprep.subr.mxu0 %v273
    %544 = vmatpush1.msra.mxu0 %v272
    %545 = vmatprep.subr.mxu0 %v277
    %546 = vmatpush1.msra.mxu0 %v276
    %547 = vmatprep.subr.mxu0 %v281
    %548 = vmatpush1.msra.mxu0 %v280
    %549 = vmatprep.subr.mxu0 %v285
    %550 = vmatpush1.msra.mxu0 %v284
    %551 = vmatprep.subr.mxu0 %v289
    %552 = vmatpush1.msra.mxu0 %v288
    %553 = vmatprep.subr.mxu0 0.0
    %554 = vmatpush1.msra.mxu0 0.0
    %555 = vmatprep.subr.mxu0 0.0
    %556 = vmatpush1.msra.mxu0 0.0
    %557 = vmatprep.subr.mxu0 0.0
    %558 = vmatpush1.msra.mxu0 0.0
    %559 = vmatprep.subr.mxu0 0.0
    %560 = vmatpush1.msra.mxu0 0.0
    %561 = vmatprep.subr.mxu0 0.0
    %562 = vmatpush1.msra.mxu0 0.0
    %563 = vmatprep.subr.mxu0 0.0
    %564 = vmatpush1.msra.mxu0 0.0
    %565 = vmatprep.subr.mxu0 0.0
    %566 = vmatpush1.msra.mxu0 0.0
    %567 = vmatprep.subr.mxu0 0.0
    %568 = vmatpush1.msra.mxu0 0.0
    %569 = vmatprep.subr.mxu0 0.0
    %570 = vmatpush1.msra.mxu0 0.0
    %571 = vmatprep.subr.mxu0 0.0
    %572 = vmatpush1.msra.mxu0 0.0
    %573 = vmatprep.subr.mxu0 0.0
    %574 = vmatpush1.msra.mxu0 0.0
    %575 = vmatprep.subr.mxu0 0.0
    %576 = vmatpush1.msra.mxu0 0.0
    %577 = vmatprep.subr.mxu0 0.0
    %578 = vmatpush1.msra.mxu0 0.0
    %579 = vmatprep.subr.mxu0 0.0
    %580 = vmatpush1.msra.mxu0 0.0
    %581 = vmatprep.subr.mxu0 0.0
    %582 = vmatpush1.msra.mxu0 0.0
    %583 = vmatprep.subr.mxu0 0.0
    %584 = vmatpush1.msra.mxu0 0.0
    %585 = vmatprep.mubr.f32.mxu0 0.0
    %586 = vmatmul.mubr.f32.gmra.mrb[0].mxu0 %v497
    %v587 = vpop.f32.mrb[0].mxu0
    %v588 = vadd.f32 %v504, %v587
    %v589 = vpop.f32.mrb[0].mxu0
    %v590 = vadd.f32 %v508, %v589
    %591 = vdwg.mxu0
    %592 = vmatprep.subr.mxu0 %v231
    %593 = vmatpush1.msra.mxu0 %v230
    %594 = vmatprep.subr.mxu0 %v235
    %595 = vmatpush1.msra.mxu0 %v234
    %596 = vmatprep.subr.mxu0 %v239
    %597 = vmatpush1.msra.mxu0 %v238
    %598 = vmatprep.subr.mxu0 %v243
    %599 = vmatpush1.msra.mxu0 %v242
    %600 = vmatprep.subr.mxu0 %v247
    %601 = vmatpush1.msra.mxu0 %v246
    %602 = vmatprep.subr.mxu0 %v251
    %603 = vmatpush1.msra.mxu0 %v250
    %604 = vmatprep.subr.mxu0 %v255
    %605 = vmatpush1.msra.mxu0 %v254
    %606 = vmatprep.subr.mxu0 %v259
    %607 = vmatpush1.msra.mxu0 %v258
    %608 = vmatprep.subr.mxu0 %v263
    %609 = vmatpush1.msra.mxu0 %v262
    %610 = vmatprep.subr.mxu0 %v267
    %611 = vmatpush1.msra.mxu0 %v266
    %612 = vmatprep.subr.mxu0 %v271
    %613 = vmatpush1.msra.mxu0 %v270
    %614 = vmatprep.subr.mxu0 %v275
    %615 = vmatpush1.msra.mxu0 %v274
    %616 = vmatprep.subr.mxu0 %v279
    %617 = vmatpush1.msra.mxu0 %v278
    %618 = vmatprep.subr.mxu0 %v283
    %619 = vmatpush1.msra.mxu0 %v282
    %620 = vmatprep.subr.mxu0 %v287
    %621 = vmatpush1.msra.mxu0 %v286
    %622 = vmatprep.subr.mxu0 %v291
    %623 = vmatpush1.msra.mxu0 %v290
    %624 = vmatprep.subr.mxu0 0.0
    %625 = vmatpush1.msra.mxu0 0.0
    %626 = vmatprep.subr.mxu0 0.0
    %627 = vmatpush1.msra.mxu0 0.0
    %628 = vmatprep.subr.mxu0 0.0
    %629 = vmatpush1.msra.mxu0 0.0
    %630 = vmatprep.subr.mxu0 0.0
    %631 = vmatpush1.msra.mxu0 0.0
    %632 = vmatprep.subr.mxu0 0.0
    %633 = vmatpush1.msra.mxu0 0.0
    %634 = vmatprep.subr.mxu0 0.0
    %635 = vmatpush1.msra.mxu0 0.0
    %636 = vmatprep.subr.mxu0 0.0
    %637 = vmatpush1.msra.mxu0 0.0
    %638 = vmatprep.subr.mxu0 0.0
    %639 = vmatpush1.msra.mxu0 0.0
    %640 = vmatprep.subr.mxu0 0.0
    %641 = vmatpush1.msra.mxu0 0.0
    %642 = vmatprep.subr.mxu0 0.0
    %643 = vmatpush1.msra.mxu0 0.0
    %644 = vmatprep.subr.mxu0 0.0
    %645 = vmatpush1.msra.mxu0 0.0
    %646 = vmatprep.subr.mxu0 0.0
    %647 = vmatpush1.msra.mxu0 0.0
    %648 = vmatprep.subr.mxu0 0.0
    %649 = vmatpush1.msra.mxu0 0.0
    %650 = vmatprep.subr.mxu0 0.0
    %651 = vmatpush1.msra.mxu0 0.0
    %652 = vmatprep.subr.mxu0 0.0
    %653 = vmatpush1.msra.mxu0 0.0
    %654 = vmatprep.subr.mxu0 0.0
    %655 = vmatpush1.msra.mxu0 0.0
    %656 = vmatprep.mubr.f32.mxu0 0.0
    %657 = vmatmul.mubr.f32.gmra.mrb[0].mxu0 %v497
    %v658 = vpop.f32.mrb[0].mxu0
    %v659 = vadd.f32 %v512, %v658
    %v660 = vpop.f32.mrb[0].mxu0
    %v661 = vadd.f32 %v516, %v660
    %662 = vdwg.mxu0
    %v663 = vxor.u32 %v588, 2147483648
    %v664 = vxor.u32 %v590, 2147483648
    %v665 = vxor.u32 %v659, 2147483648
    %v666 = vmul.f32 %v663, 1.442695
    %v667 = vpow.pop %v666
    %v668 = vmul.f32 %v664, 1.442695
    %v669 = vpow.pop %v668
    %v670 = vmul.f32 %v665, 1.442695
    %v671 = vpow.pop %v670
    %v672 = vadd.f32 %v667, 1.0
    %v673 = vadd.f32 %v669, 1.0
    %v674 = vadd.f32 %v671, 1.0
    %v675 = vrcp.pop %v672
    %v676 = vmul.f32 1.0, %v675
    %v677 = vrcp.pop %v673
    %v678 = vmul.f32 1.0, %v677
    %v679 = vrcp.pop %v674
    %v680 = vmul.f32 1.0, %v679
    %v681 = vtanh.pop %v661
    %v682 = vmul.f32 %v678, %v495
    %v683 = vmul.f32 %v676, %v681
    %v684 = vadd.f32 %v682, %v683
    %v685 = vtanh.pop %v684
    %v686 = vmul.f32 %v680, %v685
    %s687 = scalar_lea.vmem [#allocation2], 3
    %v688 = vld [vmem:[%s687] ss:$8 sm:$0xf]
    %v690 = vlaneseq
    %v691 = vshrl.u32 %v690, 7
    %v692 = vsub.s32 0, %v691
    %v693 = vrot.slane %v688, %v692
    %v694 = vlaneseq
    %v695 = vshrl.u32 %v694, 7
    %v696 = vsub.s32 1, %v695
    %v697 = vrot.slane %v688, %v696
    %v698 = vlaneseq
    %v699 = vshrl.u32 %v698, 7
    %v700 = vsub.s32 2, %v699
    %v701 = vrot.slane %v688, %v700
    %v702 = vlaneseq
    %v703 = vshrl.u32 %v702, 7
    %v704 = vsub.s32 3, %v703
    %v705 = vrot.slane %v688, %v704
    %710 = vmatprep.subr.mxu0 %v229
    %711 = vmatpush1.msra.mxu0 %v228
    %712 = vmatprep.subr.mxu0 %v233
    %713 = vmatpush1.msra.mxu0 %v232
    %714 = vmatprep.subr.mxu0 %v237
    %715 = vmatpush1.msra.mxu0 %v236
    %716 = vmatprep.subr.mxu0 %v241
    %717 = vmatpush1.msra.mxu0 %v240
    %718 = vmatprep.subr.mxu0 %v245
    %719 = vmatpush1.msra.mxu0 %v244
    %720 = vmatprep.subr.mxu0 %v249
    %721 = vmatpush1.msra.mxu0 %v248
    %722 = vmatprep.subr.mxu0 %v253
    %723 = vmatpush1.msra.mxu0 %v252
    %724 = vmatprep.subr.mxu0 %v257
    %725 = vmatpush1.msra.mxu0 %v256
    %726 = vmatprep.subr.mxu0 %v261
    %727 = vmatpush1.msra.mxu0 %v260
    %728 = vmatprep.subr.mxu0 %v265
    %729 = vmatpush1.msra.mxu0 %v264
    %730 = vmatprep.subr.mxu0 %v269
    %731 = vmatpush1.msra.mxu0 %v268
    %732 = vmatprep.subr.mxu0 %v273
    %733 = vmatpush1.msra.mxu0 %v272
    %734 = vmatprep.subr.mxu0 %v277
    %735 = vmatpush1.msra.mxu0 %v276
    %736 = vmatprep.subr.mxu0 %v281
    %737 = vmatpush1.msra.mxu0 %v280
    %738 = vmatprep.subr.mxu0 %v285
    %739 = vmatpush1.msra.mxu0 %v284
    %740 = vmatprep.subr.mxu0 %v289
    %741 = vmatpush1.msra.mxu0 %v288
    %742 = vmatprep.subr.mxu0 0.0
    %743 = vmatpush1.msra.mxu0 0.0
    %744 = vmatprep.subr.mxu0 0.0
    %745 = vmatpush1.msra.mxu0 0.0
    %746 = vmatprep.subr.mxu0 0.0
    %747 = vmatpush1.msra.mxu0 0.0
    %748 = vmatprep.subr.mxu0 0.0
    %749 = vmatpush1.msra.mxu0 0.0
    %750 = vmatprep.subr.mxu0 0.0
    %751 = vmatpush1.msra.mxu0 0.0
    %752 = vmatprep.subr.mxu0 0.0
    %753 = vmatpush1.msra.mxu0 0.0
    %754 = vmatprep.subr.mxu0 0.0
    %755 = vmatpush1.msra.mxu0 0.0
    %756 = vmatprep.subr.mxu0 0.0
    %757 = vmatpush1.msra.mxu0 0.0
    %758 = vmatprep.subr.mxu0 0.0
    %759 = vmatpush1.msra.mxu0 0.0
    %760 = vmatprep.subr.mxu0 0.0
    %761 = vmatpush1.msra.mxu0 0.0
    %762 = vmatprep.subr.mxu0 0.0
    %763 = vmatpush1.msra.mxu0 0.0
    %764 = vmatprep.subr.mxu0 0.0
    %765 = vmatpush1.msra.mxu0 0.0
    %766 = vmatprep.subr.mxu0 0.0
    %767 = vmatpush1.msra.mxu0 0.0
    %768 = vmatprep.subr.mxu0 0.0
    %769 = vmatpush1.msra.mxu0 0.0
    %770 = vmatprep.subr.mxu0 0.0
    %771 = vmatpush1.msra.mxu0 0.0
    %772 = vmatprep.subr.mxu0 0.0
    %773 = vmatpush1.msra.mxu0 0.0
    %774 = vmatprep.mubr.f32.mxu0 0.0
    %775 = vmatmul.mubr.f32.gmra.mrb[0].mxu0 %v686
    %v776 = vpop.f32.mrb[0].mxu0
    %v777 = vadd.f32 %v693, %v776
    %v778 = vpop.f32.mrb[0].mxu0
    %v779 = vadd.f32 %v697, %v778
    %780 = vdwg.mxu0
    %781 = vmatprep.subr.mxu0 %v231
    %782 = vmatpush1.msra.mxu0 %v230
    %783 = vmatprep.subr.mxu0 %v235
    %784 = vmatpush1.msra.mxu0 %v234
    %785 = vmatprep.subr.mxu0 %v239
    %786 = vmatpush1.msra.mxu0 %v238
    %787 = vmatprep.subr.mxu0 %v243
    %788 = vmatpush1.msra.mxu0 %v242
    %789 = vmatprep.subr.mxu0 %v247
    %790 = vmatpush1.msra.mxu0 %v246
    %791 = vmatprep.subr.mxu0 %v251
    %792 = vmatpush1.msra.mxu0 %v250
    %793 = vmatprep.subr.mxu0 %v255
    %794 = vmatpush1.msra.mxu0 %v254
    %795 = vmatprep.subr.mxu0 %v259
    %796 = vmatpush1.msra.mxu0 %v258
    %797 = vmatprep.subr.mxu0 %v263
    %798 = vmatpush1.msra.mxu0 %v262
    %799 = vmatprep.subr.mxu0 %v267
    %800 = vmatpush1.msra.mxu0 %v266
    %801 = vmatprep.subr.mxu0 %v271
    %802 = vmatpush1.msra.mxu0 %v270
    %803 = vmatprep.subr.mxu0 %v275
    %804 = vmatpush1.msra.mxu0 %v274
    %805 = vmatprep.subr.mxu0 %v279
    %806 = vmatpush1.msra.mxu0 %v278
    %807 = vmatprep.subr.mxu0 %v283
    %808 = vmatpush1.msra.mxu0 %v282
    %809 = vmatprep.subr.mxu0 %v287
    %810 = vmatpush1.msra.mxu0 %v286
    %811 = vmatprep.subr.mxu0 %v291
    %812 = vmatpush1.msra.mxu0 %v290
    %813 = vmatprep.subr.mxu0 0.0
    %814 = vmatpush1.msra.mxu0 0.0
    %815 = vmatprep.subr.mxu0 0.0
    %816 = vmatpush1.msra.mxu0 0.0
    %817 = vmatprep.subr.mxu0 0.0
    %818 = vmatpush1.msra.mxu0 0.0
    %819 = vmatprep.subr.mxu0 0.0
    %820 = vmatpush1.msra.mxu0 0.0
    %821 = vmatprep.subr.mxu0 0.0
    %822 = vmatpush1.msra.mxu0 0.0
    %823 = vmatprep.subr.mxu0 0.0
    %824 = vmatpush1.msra.mxu0 0.0
    %825 = vmatprep.subr.mxu0 0.0
    %826 = vmatpush1.msra.mxu0 0.0
    %827 = vmatprep.subr.mxu0 0.0
    %828 = vmatpush1.msra.mxu0 0.0
    %829 = vmatprep.subr.mxu0 0.0
    %830 = vmatpush1.msra.mxu0 0.0
    %831 = vmatprep.subr.mxu0 0.0
    %832 = vmatpush1.msra.mxu0 0.0
    %833 = vmatprep.subr.mxu0 0.0
    %834 = vmatpush1.msra.mxu0 0.0
    %835 = vmatprep.subr.mxu0 0.0
    %836 = vmatpush1.msra.mxu0 0.0
    %837 = vmatprep.subr.mxu0 0.0
    %838 = vmatpush1.msra.mxu0 0.0
    %839 = vmatprep.subr.mxu0 0.0
    %840 = vmatpush1.msra.mxu0 0.0
    %841 = vmatprep.subr.mxu0 0.0
    %842 = vmatpush1.msra.mxu0 0.0
    %843 = vmatprep.subr.mxu0 0.0
    %844 = vmatpush1.msra.mxu0 0.0
    %845 = vmatprep.mubr.f32.mxu0 0.0
    %846 = vmatmul.mubr.f32.gmra.mrb[0].mxu0 %v686
    %v847 = vpop.f32.mrb[0].mxu0
    %v848 = vadd.f32 %v701, %v847
    %v849 = vpop.f32.mrb[0].mxu0
    %v850 = vadd.f32 %v705, %v849
    %851 = vdwg.mxu0
    %v852 = vxor.u32 %v777, 2147483648
    %v853 = vxor.u32 %v779, 2147483648
    %v854 = vxor.u32 %v848, 2147483648
    %v855 = vmul.f32 %v852, 1.442695
    %v856 = vpow.pop %v855
    %v857 = vmul.f32 %v853, 1.442695
    %v858 = vpow.pop %v857
    %v859 = vmul.f32 %v854, 1.442695
    %v860 = vpow.pop %v859
    %v861 = vadd.f32 %v856, 1.0
    %v862 = vadd.f32 %v858, 1.0
    %v863 = vadd.f32 %v860, 1.0
    %v864 = vrcp.pop %v861
    %v865 = vmul.f32 1.0, %v864
    %v866 = vrcp.pop %v862
    %v867 = vmul.f32 1.0, %v866
    %v868 = vrcp.pop %v863
    %v869 = vmul.f32 1.0, %v868
    %v870 = vtanh.pop %v850
    %v871 = vmul.f32 %v867, %v684
    %v872 = vmul.f32 %v865, %v870
    %v873 = vadd.f32 %v871, %v872
    %v874 = vtanh.pop %v873
    %v875 = vmul.f32 %v869, %v874
    %s876 = scalar_lea.vmem [#allocation2], 4
    %v877 = vld [vmem:[%s876] ss:$8 sm:$0xf]
    %v879 = vlaneseq
    %v880 = vshrl.u32 %v879, 7
    %v881 = vsub.s32 0, %v880
    %v882 = vrot.slane %v877, %v881
    %v883 = vlaneseq
    %v884 = vshrl.u32 %v883, 7
    %v885 = vsub.s32 1, %v884
    %v886 = vrot.slane %v877, %v885
    %v887 = vlaneseq
    %v888 = vshrl.u32 %v887, 7
    %v889 = vsub.s32 2, %v888
    %v890 = vrot.slane %v877, %v889
    %v891 = vlaneseq
    %v892 = vshrl.u32 %v891, 7
    %v893 = vsub.s32 3, %v892
    %v894 = vrot.slane %v877, %v893
    %899 = vmatprep.subr.mxu0 %v229
    %900 = vmatpush1.msra.mxu0 %v228
    %901 = vmatprep.subr.mxu0 %v233
    %902 = vmatpush1.msra.mxu0 %v232
    %903 = vmatprep.subr.mxu0 %v237
    %904 = vmatpush1.msra.mxu0 %v236
    %905 = vmatprep.subr.mxu0 %v241
    %906 = vmatpush1.msra.mxu0 %v240
    %907 = vmatprep.subr.mxu0 %v245
    %908 = vmatpush1.msra.mxu0 %v244
    %909 = vmatprep.subr.mxu0 %v249
    %910 = vmatpush1.msra.mxu0 %v248
    %911 = vmatprep.subr.mxu0 %v253
    %912 = vmatpush1.msra.mxu0 %v252
    %913 = vmatprep.subr.mxu0 %v257
    %914 = vmatpush1.msra.mxu0 %v256
    %915 = vmatprep.subr.mxu0 %v261
    %916 = vmatpush1.msra.mxu0 %v260
    %917 = vmatprep.subr.mxu0 %v265
    %918 = vmatpush1.msra.mxu0 %v264
    %919 = vmatprep.subr.mxu0 %v269
    %920 = vmatpush1.msra.mxu0 %v268
    %921 = vmatprep.subr.mxu0 %v273
    %922 = vmatpush1.msra.mxu0 %v272
    %923 = vmatprep.subr.mxu0 %v277
    %924 = vmatpush1.msra.mxu0 %v276
    %925 = vmatprep.subr.mxu0 %v281
    %926 = vmatpush1.msra.mxu0 %v280
    %927 = vmatprep.subr.mxu0 %v285
    %928 = vmatpush1.msra.mxu0 %v284
    %929 = vmatprep.subr.mxu0 %v289
    %930 = vmatpush1.msra.mxu0 %v288
    %931 = vmatprep.subr.mxu0 0.0
    %932 = vmatpush1.msra.mxu0 0.0
    %933 = vmatprep.subr.mxu0 0.0
    %934 = vmatpush1.msra.mxu0 0.0
    %935 = vmatprep.subr.mxu0 0.0
    %936 = vmatpush1.msra.mxu0 0.0
    %937 = vmatprep.subr.mxu0 0.0
    %938 = vmatpush1.msra.mxu0 0.0
    %939 = vmatprep.subr.mxu0 0.0
    %940 = vmatpush1.msra.mxu0 0.0
    %941 = vmatprep.subr.mxu0 0.0
    %942 = vmatpush1.msra.mxu0 0.0
    %943 = vmatprep.subr.mxu0 0.0
    %944 = vmatpush1.msra.mxu0 0.0
    %945 = vmatprep.subr.mxu0 0.0
    %946 = vmatpush1.msra.mxu0 0.0
    %947 = vmatprep.subr.mxu0 0.0
    %948 = vmatpush1.msra.mxu0 0.0
    %949 = vmatprep.subr.mxu0 0.0
    %950 = vmatpush1.msra.mxu0 0.0
    %951 = vmatprep.subr.mxu0 0.0
    %952 = vmatpush1.msra.mxu0 0.0
    %953 = vmatprep.subr.mxu0 0.0
    %954 = vmatpush1.msra.mxu0 0.0
    %955 = vmatprep.subr.mxu0 0.0
    %956 = vmatpush1.msra.mxu0 0.0
    %957 = vmatprep.subr.mxu0 0.0
    %958 = vmatpush1.msra.mxu0 0.0
    %959 = vmatprep.subr.mxu0 0.0
    %960 = vmatpush1.msra.mxu0 0.0
    %961 = vmatprep.subr.mxu0 0.0
    %962 = vmatpush1.msra.mxu0 0.0
    %963 = vmatprep.mubr.f32.mxu0 0.0
    %964 = vmatmul.mubr.f32.gmra.mrb[0].mxu0 %v875
    %v965 = vpop.f32.mrb[0].mxu0
    %v966 = vadd.f32 %v882, %v965
    %v967 = vpop.f32.mrb[0].mxu0
    %v968 = vadd.f32 %v886, %v967
    %969 = vdwg.mxu0
    %970 = vmatprep.subr.mxu0 %v231
    %971 = vmatpush1.msra.mxu0 %v230
    %972 = vmatprep.subr.mxu0 %v235
    %973 = vmatpush1.msra.mxu0 %v234
    %974 = vmatprep.subr.mxu0 %v239
    %975 = vmatpush1.msra.mxu0 %v238
    %976 = vmatprep.subr.mxu0 %v243
    %977 = vmatpush1.msra.mxu0 %v242
    %978 = vmatprep.subr.mxu0 %v247
    %979 = vmatpush1.msra.mxu0 %v246
    %980 = vmatprep.subr.mxu0 %v251
    %981 = vmatpush1.msra.mxu0 %v250
    %982 = vmatprep.subr.mxu0 %v255
    %983 = vmatpush1.msra.mxu0 %v254
    %984 = vmatprep.subr.mxu0 %v259
    %985 = vmatpush1.msra.mxu0 %v258
    %986 = vmatprep.subr.mxu0 %v263
    %987 = vmatpush1.msra.mxu0 %v262
    %988 = vmatprep.subr.mxu0 %v267
    %989 = vmatpush1.msra.mxu0 %v266
    %990 = vmatprep.subr.mxu0 %v271
    %991 = vmatpush1.msra.mxu0 %v270
    %992 = vmatprep.subr.mxu0 %v275
    %993 = vmatpush1.msra.mxu0 %v274
    %994 = vmatprep.subr.mxu0 %v279
    %995 = vmatpush1.msra.mxu0 %v278
    %996 = vmatprep.subr.mxu0 %v283
    %997 = vmatpush1.msra.mxu0 %v282
    %998 = vmatprep.subr.mxu0 %v287
    %999 = vmatpush1.msra.mxu0 %v286
    %1000 = vmatprep.subr.mxu0 %v291
    %1001 = vmatpush1.msra.mxu0 %v290
    %1002 = vmatprep.subr.mxu0 0.0
    %1003 = vmatpush1.msra.mxu0 0.0
    %1004 = vmatprep.subr.mxu0 0.0
    %1005 = vmatpush1.msra.mxu0 0.0
    %1006 = vmatprep.subr.mxu0 0.0
    %1007 = vmatpush1.msra.mxu0 0.0
    %1008 = vmatprep.subr.mxu0 0.0
    %1009 = vmatpush1.msra.mxu0 0.0
    %1010 = vmatprep.subr.mxu0 0.0
    %1011 = vmatpush1.msra.mxu0 0.0
    %1012 = vmatprep.subr.mxu0 0.0
    %1013 = vmatpush1.msra.mxu0 0.0
    %1014 = vmatprep.subr.mxu0 0.0
    %1015 = vmatpush1.msra.mxu0 0.0
    %1016 = vmatprep.subr.mxu0 0.0
    %1017 = vmatpush1.msra.mxu0 0.0
    %1018 = vmatprep.subr.mxu0 0.0
    %1019 = vmatpush1.msra.mxu0 0.0
    %1020 = vmatprep.subr.mxu0 0.0
    %1021 = vmatpush1.msra.mxu0 0.0
    %1022 = vmatprep.subr.mxu0 0.0
    %1023 = vmatpush1.msra.mxu0 0.0
    %1024 = vmatprep.subr.mxu0 0.0
    %1025 = vmatpush1.msra.mxu0 0.0
    %1026 = vmatprep.subr.mxu0 0.0
    %1027 = vmatpush1.msra.mxu0 0.0
    %1028 = vmatprep.subr.mxu0 0.0
    %1029 = vmatpush1.msra.mxu0 0.0
    %1030 = vmatprep.subr.mxu0 0.0
    %1031 = vmatpush1.msra.mxu0 0.0
    %1032 = vmatprep.subr.mxu0 0.0
    %1033 = vmatpush1.msra.mxu0 0.0
    %1034 = vmatprep.mubr.f32.mxu0 0.0
    %1035 = vmatmul.mubr.f32.gmra.mrb[0].mxu0 %v875
    %v1036 = vpop.f32.mrb[0].mxu0
    %v1037 = vadd.f32 %v890, %v1036
    %v1038 = vpop.f32.mrb[0].mxu0
    %v1039 = vadd.f32 %v894, %v1038
    %1040 = vdwg.mxu0
    %v1041 = vxor.u32 %v966, 2147483648
    %v1042 = vxor.u32 %v968, 2147483648
    %v1043 = vxor.u32 %v1037, 2147483648
    %v1044 = vmul.f32 %v1041, 1.442695
    %v1045 = vpow.pop %v1044
    %v1046 = vmul.f32 %v1042, 1.442695
    %v1047 = vpow.pop %v1046
    %v1048 = vmul.f32 %v1043, 1.442695
    %v1049 = vpow.pop %v1048
    %v1050 = vadd.f32 %v1045, 1.0
    %v1051 = vadd.f32 %v1047, 1.0
    %v1052 = vadd.f32 %v1049, 1.0
    %v1053 = vrcp.pop %v1050
    %v1054 = vmul.f32 1.0, %v1053
    %v1055 = vrcp.pop %v1051
    %v1056 = vmul.f32 1.0, %v1055
    %v1057 = vrcp.pop %v1052
    %v1058 = vmul.f32 1.0, %v1057
    %v1059 = vtanh.pop %v1039
    %v1060 = vmul.f32 %v1056, %v873
    %v1061 = vmul.f32 %v1054, %v1059
    %v1062 = vadd.f32 %v1060, %v1061
    %v1063 = vtanh.pop %v1062
    %v1064 = vmul.f32 %v1058, %v1063
    %s1065 = scalar_lea.vmem [#allocation2], 5
    %v1066 = vld [vmem:[%s1065] ss:$8 sm:$0xf]
    %v1068 = vlaneseq
    %v1069 = vshrl.u32 %v1068, 7
    %v1070 = vsub.s32 0, %v1069
    %v1071 = vrot.slane %v1066, %v1070
    %v1072 = vlaneseq
    %v1073 = vshrl.u32 %v1072, 7
    %v1074 = vsub.s32 1, %v1073
    %v1075 = vrot.slane %v1066, %v1074
    %v1076 = vlaneseq
    %v1077 = vshrl.u32 %v1076, 7
    %v1078 = vsub.s32 2, %v1077
    %v1079 = vrot.slane %v1066, %v1078
    %v1080 = vlaneseq
    %v1081 = vshrl.u32 %v1080, 7
    %v1082 = vsub.s32 3, %v1081
    %v1083 = vrot.slane %v1066, %v1082
    %1088 = vmatprep.subr.mxu0 %v229
    %1089 = vmatpush1.msra.mxu0 %v228
    %1090 = vmatprep.subr.mxu0 %v233
    %1091 = vmatpush1.msra.mxu0 %v232
    %1092 = vmatprep.subr.mxu0 %v237
    %1093 = vmatpush1.msra.mxu0 %v236
    %1094 = vmatprep.subr.mxu0 %v241
    %1095 = vmatpush1.msra.mxu0 %v240
    %1096 = vmatprep.subr.mxu0 %v245
    %1097 = vmatpush1.msra.mxu0 %v244
    %1098 = vmatprep.subr.mxu0 %v249
    %1099 = vmatpush1.msra.mxu0 %v248
    %1100 = vmatprep.subr.mxu0 %v253
    %1101 = vmatpush1.msra.mxu0 %v252
    %1102 = vmatprep.subr.mxu0 %v257
    %1103 = vmatpush1.msra.mxu0 %v256
    %1104 = vmatprep.subr.mxu0 %v261
    %1105 = vmatpush1.msra.mxu0 %v260
    %1106 = vmatprep.subr.mxu0 %v265
    %1107 = vmatpush1.msra.mxu0 %v264
    %1108 = vmatprep.subr.mxu0 %v269
    %1109 = vmatpush1.msra.mxu0 %v268
    %1110 = vmatprep.subr.mxu0 %v273
    %1111 = vmatpush1.msra.mxu0 %v272
    %1112 = vmatprep.subr.mxu0 %v277
    %1113 = vmatpush1.msra.mxu0 %v276
    %1114 = vmatprep.subr.mxu0 %v281
    %1115 = vmatpush1.msra.mxu0 %v280
    %1116 = vmatprep.subr.mxu0 %v285
    %1117 = vmatpush1.msra.mxu0 %v284
    %1118 = vmatprep.subr.mxu0 %v289
    %1119 = vmatpush1.msra.mxu0 %v288
    %1120 = vmatprep.subr.mxu0 0.0
    %1121 = vmatpush1.msra.mxu0 0.0
    %1122 = vmatprep.subr.mxu0 0.0
    %1123 = vmatpush1.msra.mxu0 0.0
    %1124 = vmatprep.subr.mxu0 0.0
    %1125 = vmatpush1.msra.mxu0 0.0
    %1126 = vmatprep.subr.mxu0 0.0
    %1127 = vmatpush1.msra.mxu0 0.0
    %1128 = vmatprep.subr.mxu0 0.0
    %1129 = vmatpush1.msra.mxu0 0.0
    %1130 = vmatprep.subr.mxu0 0.0
    %1131 = vmatpush1.msra.mxu0 0.0
    %1132 = vmatprep.subr.mxu0 0.0
    %1133 = vmatpush1.msra.mxu0 0.0
    %1134 = vmatprep.subr.mxu0 0.0
    %1135 = vmatpush1.msra.mxu0 0.0
    %1136 = vmatprep.subr.mxu0 0.0
    %1137 = vmatpush1.msra.mxu0 0.0
    %1138 = vmatprep.subr.mxu0 0.0
    %1139 = vmatpush1.msra.mxu0 0.0
    %1140 = vmatprep.subr.mxu0 0.0
    %1141 = vmatpush1.msra.mxu0 0.0
    %1142 = vmatprep.subr.mxu0 0.0
    %1143 = vmatpush1.msra.mxu0 0.0
    %1144 = vmatprep.subr.mxu0 0.0
    %1145 = vmatpush1.msra.mxu0 0.0
    %1146 = vmatprep.subr.mxu0 0.0
    %1147 = vmatpush1.msra.mxu0 0.0
    %1148 = vmatprep.subr.mxu0 0.0
    %1149 = vmatpush1.msra.mxu0 0.0
    %1150 = vmatprep.subr.mxu0 0.0
    %1151 = vmatpush1.msra.mxu0 0.0
    %1152 = vmatprep.mubr.f32.mxu0 0.0
    %1153 = vmatmul.mubr.f32.gmra.mrb[0].mxu0 %v1064
    %v1154 = vpop.f32.mrb[0].mxu0
    %v1155 = vadd.f32 %v1071, %v1154
    %v1156 = vpop.f32.mrb[0].mxu0
    %v1157 = vadd.f32 %v1075, %v1156
    %1158 = vdwg.mxu0
    %1159 = vmatprep.subr.mxu0 %v231
    %1160 = vmatpush1.msra.mxu0 %v230
    %1161 = vmatprep.subr.mxu0 %v235
    %1162 = vmatpush1.msra.mxu0 %v234
    %1163 = vmatprep.subr.mxu0 %v239
    %1164 = vmatpush1.msra.mxu0 %v238
    %1165 = vmatprep.subr.mxu0 %v243
    %1166 = vmatpush1.msra.mxu0 %v242
    %1167 = vmatprep.subr.mxu0 %v247
    %1168 = vmatpush1.msra.mxu0 %v246
    %1169 = vmatprep.subr.mxu0 %v251
    %1170 = vmatpush1.msra.mxu0 %v250
    %1171 = vmatprep.subr.mxu0 %v255
    %1172 = vmatpush1.msra.mxu0 %v254
    %1173 = vmatprep.subr.mxu0 %v259
    %1174 = vmatpush1.msra.mxu0 %v258
    %1175 = vmatprep.subr.mxu0 %v263
    %1176 = vmatpush1.msra.mxu0 %v262
    %1177 = vmatprep.subr.mxu0 %v267
    %1178 = vmatpush1.msra.mxu0 %v266
    %1179 = vmatprep.subr.mxu0 %v271
    %1180 = vmatpush1.msra.mxu0 %v270
    %1181 = vmatprep.subr.mxu0 %v275
    %1182 = vmatpush1.msra.mxu0 %v274
    %1183 = vmatprep.subr.mxu0 %v279
    %1184 = vmatpush1.msra.mxu0 %v278
    %1185 = vmatprep.subr.mxu0 %v283
    %1186 = vmatpush1.msra.mxu0 %v282
    %1187 = vmatprep.subr.mxu0 %v287
    %1188 = vmatpush1.msra.mxu0 %v286
    %1189 = vmatprep.subr.mxu0 %v291
    %1190 = vmatpush1.msra.mxu0 %v290
    %1191 = vmatprep.subr.mxu0 0.0
    %1192 = vmatpush1.msra.mxu0 0.0
    %1193 = vmatprep.subr.mxu0 0.0
    %1194 = vmatpush1.msra.mxu0 0.0
    %1195 = vmatprep.subr.mxu0 0.0
    %1196 = vmatpush1.msra.mxu0 0.0
    %1197 = vmatprep.subr.mxu0 0.0
    %1198 = vmatpush1.msra.mxu0 0.0
    %1199 = vmatprep.subr.mxu0 0.0
    %1200 = vmatpush1.msra.mxu0 0.0
    %1201 = vmatprep.subr.mxu0 0.0
    %1202 = vmatpush1.msra.mxu0 0.0
    %1203 = vmatprep.subr.mxu0 0.0
    %1204 = vmatpush1.msra.mxu0 0.0
    %1205 = vmatprep.subr.mxu0 0.0
    %1206 = vmatpush1.msra.mxu0 0.0
    %1207 = vmatprep.subr.mxu0 0.0
    %1208 = vmatpush1.msra.mxu0 0.0
    %1209 = vmatprep.subr.mxu0 0.0
    %1210 = vmatpush1.msra.mxu0 0.0
    %1211 = vmatprep.subr.mxu0 0.0
    %1212 = vmatpush1.msra.mxu0 0.0
    %1213 = vmatprep.subr.mxu0 0.0
    %1214 = vmatpush1.msra.mxu0 0.0
    %1215 = vmatprep.subr.mxu0 0.0
    %1216 = vmatpush1.msra.mxu0 0.0
    %1217 = vmatprep.subr.mxu0 0.0
    %1218 = vmatpush1.msra.mxu0 0.0
    %1219 = vmatprep.subr.mxu0 0.0
    %1220 = vmatpush1.msra.mxu0 0.0
    %1221 = vmatprep.subr.mxu0 0.0
    %1222 = vmatpush1.msra.mxu0 0.0
    %1223 = vmatprep.mubr.f32.mxu0 0.0
    %1224 = vmatmul.mubr.f32.gmra.mrb[0].mxu0 %v1064
    %v1225 = vpop.f32.mrb[0].mxu0
    %v1226 = vadd.f32 %v1079, %v1225
    %v1227 = vpop.f32.mrb[0].mxu0
    %v1228 = vadd.f32 %v1083, %v1227
    %1229 = vdwg.mxu0
    %v1230 = vxor.u32 %v1155, 2147483648
    %v1231 = vxor.u32 %v1157, 2147483648
    %v1232 = vxor.u32 %v1226, 2147483648
    %v1233 = vmul.f32 %v1230, 1.442695
    %v1234 = vpow.pop %v1233
    %v1235 = vmul.f32 %v1231, 1.442695
    %v1236 = vpow.pop %v1235
    %v1237 = vmul.f32 %v1232, 1.442695
    %v1238 = vpow.pop %v1237
    %v1239 = vadd.f32 %v1234, 1.0
    %v1240 = vadd.f32 %v1236, 1.0
    %v1241 = vadd.f32 %v1238, 1.0
    %v1242 = vrcp.pop %v1239
    %v1243 = vmul.f32 1.0, %v1242
    %v1244 = vrcp.pop %v1240
    %v1245 = vmul.f32 1.0, %v1244
    %v1246 = vrcp.pop %v1241
    %v1247 = vmul.f32 1.0, %v1246
    %v1248 = vtanh.pop %v1228
    %v1249 = vmul.f32 %v1245, %v1062
    %v1250 = vmul.f32 %v1243, %v1248
    %v1251 = vadd.f32 %v1249, %v1250
    %v1252 = vtanh.pop %v1251
    %v1253 = vmul.f32 %v1247, %v1252
    %s1254 = scalar_lea.vmem [#allocation2], 6
    %v1255 = vld [vmem:[%s1254] ss:$8 sm:$0xf]
    %v1257 = vlaneseq
    %v1258 = vshrl.u32 %v1257, 7
    %v1259 = vsub.s32 0, %v1258
    %v1260 = vrot.slane %v1255, %v1259
    %v1261 = vlaneseq
    %v1262 = vshrl.u32 %v1261, 7
    %v1263 = vsub.s32 1, %v1262
    %v1264 = vrot.slane %v1255, %v1263
    %v1265 = vlaneseq
    %v1266 = vshrl.u32 %v1265, 7
    %v1267 = vsub.s32 2, %v1266
    %v1268 = vrot.slane %v1255, %v1267
    %v1269 = vlaneseq
    %v1270 = vshrl.u32 %v1269, 7
    %v1271 = vsub.s32 3, %v1270
    %v1272 = vrot.slane %v1255, %v1271
    %1277 = vmatprep.subr.mxu0 %v229
    %1278 = vmatpush1.msra.mxu0 %v228
    %1279 = vmatprep.subr.mxu0 %v233
    %1280 = vmatpush1.msra.mxu0 %v232
    %1281 = vmatprep.subr.mxu0 %v237
    %1282 = vmatpush1.msra.mxu0 %v236
    %1283 = vmatprep.subr.mxu0 %v241
    %1284 = vmatpush1.msra.mxu0 %v240
    %1285 = vmatprep.subr.mxu0 %v245
    %1286 = vmatpush1.msra.mxu0 %v244
    %1287 = vmatprep.subr.mxu0 %v249
    %1288 = vmatpush1.msra.mxu0 %v248
    %1289 = vmatprep.subr.mxu0 %v253
    %1290 = vmatpush1.msra.mxu0 %v252
    %1291 = vmatprep.subr.mxu0 %v257
    %1292 = vmatpush1.msra.mxu0 %v256
    %1293 = vmatprep.subr.mxu0 %v261
    %1294 = vmatpush1.msra.mxu0 %v260
    %1295 = vmatprep.subr.mxu0 %v265
    %1296 = vmatpush1.msra.mxu0 %v264
    %1297 = vmatprep.subr.mxu0 %v269
    %1298 = vmatpush1.msra.mxu0 %v268
    %1299 = vmatprep.subr.mxu0 %v273
    %1300 = vmatpush1.msra.mxu0 %v272
    %1301 = vmatprep.subr.mxu0 %v277
    %1302 = vmatpush1.msra.mxu0 %v276
    %1303 = vmatprep.subr.mxu0 %v281
    %1304 = vmatpush1.msra.mxu0 %v280
    %1305 = vmatprep.subr.mxu0 %v285
    %1306 = vmatpush1.msra.mxu0 %v284
    %1307 = vmatprep.subr.mxu0 %v289
    %1308 = vmatpush1.msra.mxu0 %v288
    %1309 = vmatprep.subr.mxu0 0.0
    %1310 = vmatpush1.msra.mxu0 0.0
    %1311 = vmatprep.subr.mxu0 0.0
    %1312 = vmatpush1.msra.mxu0 0.0
    %1313 = vmatprep.subr.mxu0 0.0
    %1314 = vmatpush1.msra.mxu0 0.0
    %1315 = vmatprep.subr.mxu0 0.0
    %1316 = vmatpush1.msra.mxu0 0.0
    %1317 = vmatprep.subr.mxu0 0.0
    %1318 = vmatpush1.msra.mxu0 0.0
    %1319 = vmatprep.subr.mxu0 0.0
    %1320 = vmatpush1.msra.mxu0 0.0
    %1321 = vmatprep.subr.mxu0 0.0
    %1322 = vmatpush1.msra.mxu0 0.0
    %1323 = vmatprep.subr.mxu0 0.0
    %1324 = vmatpush1.msra.mxu0 0.0
    %1325 = vmatprep.subr.mxu0 0.0
    %1326 = vmatpush1.msra.mxu0 0.0
    %1327 = vmatprep.subr.mxu0 0.0
    %1328 = vmatpush1.msra.mxu0 0.0
    %1329 = vmatprep.subr.mxu0 0.0
    %1330 = vmatpush1.msra.mxu0 0.0
    %1331 = vmatprep.subr.mxu0 0.0
    %1332 = vmatpush1.msra.mxu0 0.0
    %1333 = vmatprep.subr.mxu0 0.0
    %1334 = vmatpush1.msra.mxu0 0.0
    %1335 = vmatprep.subr.mxu0 0.0
    %1336 = vmatpush1.msra.mxu0 0.0
    %1337 = vmatprep.subr.mxu0 0.0
    %1338 = vmatpush1.msra.mxu0 0.0
    %1339 = vmatprep.subr.mxu0 0.0
    %1340 = vmatpush1.msra.mxu0 0.0
    %1341 = vmatprep.mubr.f32.mxu0 0.0
    %1342 = vmatmul.mubr.f32.gmra.mrb[0].mxu0 %v1253
    %v1343 = vpop.f32.mrb[0].mxu0
    %v1344 = vadd.f32 %v1260, %v1343
    %v1345 = vpop.f32.mrb[0].mxu0
    %v1346 = vadd.f32 %v1264, %v1345
    %1347 = vdwg.mxu0
    %1348 = vmatprep.subr.mxu0 %v231
    %1349 = vmatpush1.msra.mxu0 %v230
    %1350 = vmatprep.subr.mxu0 %v235
    %1351 = vmatpush1.msra.mxu0 %v234
    %1352 = vmatprep.subr.mxu0 %v239
    %1353 = vmatpush1.msra.mxu0 %v238
    %1354 = vmatprep.subr.mxu0 %v243
    %1355 = vmatpush1.msra.mxu0 %v242
    %1356 = vmatprep.subr.mxu0 %v247
    %1357 = vmatpush1.msra.mxu0 %v246
    %1358 = vmatprep.subr.mxu0 %v251
    %1359 = vmatpush1.msra.mxu0 %v250
    %1360 = vmatprep.subr.mxu0 %v255
    %1361 = vmatpush1.msra.mxu0 %v254
    %1362 = vmatprep.subr.mxu0 %v259
    %1363 = vmatpush1.msra.mxu0 %v258
    %1364 = vmatprep.subr.mxu0 %v263
    %1365 = vmatpush1.msra.mxu0 %v262
    %1366 = vmatprep.subr.mxu0 %v267
    %1367 = vmatpush1.msra.mxu0 %v266
    %1368 = vmatprep.subr.mxu0 %v271
    %1369 = vmatpush1.msra.mxu0 %v270
    %1370 = vmatprep.subr.mxu0 %v275
    %1371 = vmatpush1.msra.mxu0 %v274
    %1372 = vmatprep.subr.mxu0 %v279
    %1373 = vmatpush1.msra.mxu0 %v278
    %1374 = vmatprep.subr.mxu0 %v283
    %1375 = vmatpush1.msra.mxu0 %v282
    %1376 = vmatprep.subr.mxu0 %v287
    %1377 = vmatpush1.msra.mxu0 %v286
    %1378 = vmatprep.subr.mxu0 %v291
    %1379 = vmatpush1.msra.mxu0 %v290
    %1380 = vmatprep.subr.mxu0 0.0
    %1381 = vmatpush1.msra.mxu0 0.0
    %1382 = vmatprep.subr.mxu0 0.0
    %1383 = vmatpush1.msra.mxu0 0.0
    %1384 = vmatprep.subr.mxu0 0.0
    %1385 = vmatpush1.msra.mxu0 0.0
    %1386 = vmatprep.subr.mxu0 0.0
    %1387 = vmatpush1.msra.mxu0 0.0
    %1388 = vmatprep.subr.mxu0 0.0
    %1389 = vmatpush1.msra.mxu0 0.0
    %1390 = vmatprep.subr.mxu0 0.0
    %1391 = vmatpush1.msra.mxu0 0.0
    %1392 = vmatprep.subr.mxu0 0.0
    %1393 = vmatpush1.msra.mxu0 0.0
    %1394 = vmatprep.subr.mxu0 0.0
    %1395 = vmatpush1.msra.mxu0 0.0
    %1396 = vmatprep.subr.mxu0 0.0
    %1397 = vmatpush1.msra.mxu0 0.0
    %1398 = vmatprep.subr.mxu0 0.0
    %1399 = vmatpush1.msra.mxu0 0.0
    %1400 = vmatprep.subr.mxu0 0.0
    %1401 = vmatpush1.msra.mxu0 0.0
    %1402 = vmatprep.subr.mxu0 0.0
    %1403 = vmatpush1.msra.mxu0 0.0
    %1404 = vmatprep.subr.mxu0 0.0
    %1405 = vmatpush1.msra.mxu0 0.0
    %1406 = vmatprep.subr.mxu0 0.0
    %1407 = vmatpush1.msra.mxu0 0.0
    %1408 = vmatprep.subr.mxu0 0.0
    %1409 = vmatpush1.msra.mxu0 0.0
    %1410 = vmatprep.subr.mxu0 0.0
    %1411 = vmatpush1.msra.mxu0 0.0
    %1412 = vmatprep.mubr.f32.mxu0 0.0
    %1413 = vmatmul.mubr.f32.gmra.mrb[0].mxu0 %v1253
    %v1414 = vpop.f32.mrb[0].mxu0
    %v1415 = vadd.f32 %v1268, %v1414
    %v1416 = vpop.f32.mrb[0].mxu0
    %v1417 = vadd.f32 %v1272, %v1416
    %1418 = vdwg.mxu0
    %v1419 = vxor.u32 %v1344, 2147483648
    %v1420 = vxor.u32 %v1346, 2147483648
    %v1421 = vxor.u32 %v1415, 2147483648
    %v1422 = vmul.f32 %v1419, 1.442695
    %v1423 = vpow.pop %v1422
    %v1424 = vmul.f32 %v1420, 1.442695
    %v1425 = vpow.pop %v1424
    %v1426 = vmul.f32 %v1421, 1.442695
    %v1427 = vpow.pop %v1426
    %v1428 = vadd.f32 %v1423, 1.0
    %v1429 = vadd.f32 %v1425, 1.0
    %v1430 = vadd.f32 %v1427, 1.0
    %v1431 = vrcp.pop %v1428
    %v1432 = vmul.f32 1.0, %v1431
    %v1433 = vrcp.pop %v1429
    %v1434 = vmul.f32 1.0, %v1433
    %v1435 = vrcp.pop %v1430
    %v1436 = vmul.f32 1.0, %v1435
    %v1437 = vtanh.pop %v1417
    %v1438 = vmul.f32 %v1434, %v1251
    %v1439 = vmul.f32 %v1432, %v1437
    %v1440 = vadd.f32 %v1438, %v1439
    %v1441 = vtanh.pop %v1440
    %v1442 = vmul.f32 %v1436, %v1441
    %s1443 = scalar_lea.vmem [#allocation2], 7
    %v1444 = vld [vmem:[%s1443] ss:$8 sm:$0xf]
    %v1446 = vlaneseq
    %v1447 = vshrl.u32 %v1446, 7
    %v1448 = vsub.s32 0, %v1447
    %v1449 = vrot.slane %v1444, %v1448
    %v1450 = vlaneseq
    %v1451 = vshrl.u32 %v1450, 7
    %v1452 = vsub.s32 1, %v1451
    %v1453 = vrot.slane %v1444, %v1452
    %v1454 = vlaneseq
    %v1455 = vshrl.u32 %v1454, 7
    %v1456 = vsub.s32 2, %v1455
    %v1457 = vrot.slane %v1444, %v1456
    %v1458 = vlaneseq
    %v1459 = vshrl.u32 %v1458, 7
    %v1460 = vsub.s32 3, %v1459
    %v1461 = vrot.slane %v1444, %v1460
    %1466 = vmatprep.subr.mxu0 %v229
    %1467 = vmatpush1.msra.mxu0 %v228
    %1468 = vmatprep.subr.mxu0 %v233
    %1469 = vmatpush1.msra.mxu0 %v232
    %1470 = vmatprep.subr.mxu0 %v237
    %1471 = vmatpush1.msra.mxu0 %v236
    %1472 = vmatprep.subr.mxu0 %v241
    %1473 = vmatpush1.msra.mxu0 %v240
    %1474 = vmatprep.subr.mxu0 %v245
    %1475 = vmatpush1.msra.mxu0 %v244
    %1476 = vmatprep.subr.mxu0 %v249
    %1477 = vmatpush1.msra.mxu0 %v248
    %1478 = vmatprep.subr.mxu0 %v253
    %1479 = vmatpush1.msra.mxu0 %v252
    %1480 = vmatprep.subr.mxu0 %v257
    %1481 = vmatpush1.msra.mxu0 %v256
    %1482 = vmatprep.subr.mxu0 %v261
    %1483 = vmatpush1.msra.mxu0 %v260
    %1484 = vmatprep.subr.mxu0 %v265
    %1485 = vmatpush1.msra.mxu0 %v264
    %1486 = vmatprep.subr.mxu0 %v269
    %1487 = vmatpush1.msra.mxu0 %v268
    %1488 = vmatprep.subr.mxu0 %v273
    %1489 = vmatpush1.msra.mxu0 %v272
    %1490 = vmatprep.subr.mxu0 %v277
    %1491 = vmatpush1.msra.mxu0 %v276
    %1492 = vmatprep.subr.mxu0 %v281
    %1493 = vmatpush1.msra.mxu0 %v280
    %1494 = vmatprep.subr.mxu0 %v285
    %1495 = vmatpush1.msra.mxu0 %v284
    %1496 = vmatprep.subr.mxu0 %v289
    %1497 = vmatpush1.msra.mxu0 %v288
    %1498 = vmatprep.subr.mxu0 0.0
    %1499 = vmatpush1.msra.mxu0 0.0
    %1500 = vmatprep.subr.mxu0 0.0
    %1501 = vmatpush1.msra.mxu0 0.0
    %1502 = vmatprep.subr.mxu0 0.0
    %1503 = vmatpush1.msra.mxu0 0.0
    %1504 = vmatprep.subr.mxu0 0.0
    %1505 = vmatpush1.msra.mxu0 0.0
    %1506 = vmatprep.subr.mxu0 0.0
    %1507 = vmatpush1.msra.mxu0 0.0
    %1508 = vmatprep.subr.mxu0 0.0
    %1509 = vmatpush1.msra.mxu0 0.0
    %1510 = vmatprep.subr.mxu0 0.0
    %1511 = vmatpush1.msra.mxu0 0.0
    %1512 = vmatprep.subr.mxu0 0.0
    %1513 = vmatpush1.msra.mxu0 0.0
    %1514 = vmatprep.subr.mxu0 0.0
    %1515 = vmatpush1.msra.mxu0 0.0
    %1516 = vmatprep.subr.mxu0 0.0
    %1517 = vmatpush1.msra.mxu0 0.0
    %1518 = vmatprep.subr.mxu0 0.0
    %1519 = vmatpush1.msra.mxu0 0.0
    %1520 = vmatprep.subr.mxu0 0.0
    %1521 = vmatpush1.msra.mxu0 0.0
    %1522 = vmatprep.subr.mxu0 0.0
    %1523 = vmatpush1.msra.mxu0 0.0
    %1524 = vmatprep.subr.mxu0 0.0
    %1525 = vmatpush1.msra.mxu0 0.0
    %1526 = vmatprep.subr.mxu0 0.0
    %1527 = vmatpush1.msra.mxu0 0.0
    %1528 = vmatprep.subr.mxu0 0.0
    %1529 = vmatpush1.msra.mxu0 0.0
    %1530 = vmatprep.mubr.f32.mxu0 0.0
    %1531 = vmatmul.mubr.f32.gmra.mrb[0].mxu0 %v1442
    %v1532 = vpop.f32.mrb[0].mxu0
    %v1533 = vadd.f32 %v1449, %v1532
    %v1534 = vpop.f32.mrb[0].mxu0
    %v1535 = vadd.f32 %v1453, %v1534
    %1536 = vdwg.mxu0
    %1537 = vmatprep.subr.mxu0 %v231
    %1538 = vmatpush1.msra.mxu0 %v230
    %1539 = vmatprep.subr.mxu0 %v235
    %1540 = vmatpush1.msra.mxu0 %v234
    %1541 = vmatprep.subr.mxu0 %v239
    %1542 = vmatpush1.msra.mxu0 %v238
    %1543 = vmatprep.subr.mxu0 %v243
    %1544 = vmatpush1.msra.mxu0 %v242
    %1545 = vmatprep.subr.mxu0 %v247
    %1546 = vmatpush1.msra.mxu0 %v246
    %1547 = vmatprep.subr.mxu0 %v251
    %1548 = vmatpush1.msra.mxu0 %v250
    %1549 = vmatprep.subr.mxu0 %v255
    %1550 = vmatpush1.msra.mxu0 %v254
    %1551 = vmatprep.subr.mxu0 %v259
    %1552 = vmatpush1.msra.mxu0 %v258
    %1553 = vmatprep.subr.mxu0 %v263
    %1554 = vmatpush1.msra.mxu0 %v262
    %1555 = vmatprep.subr.mxu0 %v267
    %1556 = vmatpush1.msra.mxu0 %v266
    %1557 = vmatprep.subr.mxu0 %v271
    %1558 = vmatpush1.msra.mxu0 %v270
    %1559 = vmatprep.subr.mxu0 %v275
    %1560 = vmatpush1.msra.mxu0 %v274
    %1561 = vmatprep.subr.mxu0 %v279
    %1562 = vmatpush1.msra.mxu0 %v278
    %1563 = vmatprep.subr.mxu0 %v283
    %1564 = vmatpush1.msra.mxu0 %v282
    %1565 = vmatprep.subr.mxu0 %v287
    %1566 = vmatpush1.msra.mxu0 %v286
    %1567 = vmatprep.subr.mxu0 %v291
    %1568 = vmatpush1.msra.mxu0 %v290
    %1569 = vmatprep.subr.mxu0 0.0
    %1570 = vmatpush1.msra.mxu0 0.0
    %1571 = vmatprep.subr.mxu0 0.0
    %1572 = vmatpush1.msra.mxu0 0.0
    %1573 = vmatprep.subr.mxu0 0.0
    %1574 = vmatpush1.msra.mxu0 0.0
    %1575 = vmatprep.subr.mxu0 0.0
    %1576 = vmatpush1.msra.mxu0 0.0
    %1577 = vmatprep.subr.mxu0 0.0
    %1578 = vmatpush1.msra.mxu0 0.0
    %1579 = vmatprep.subr.mxu0 0.0
    %1580 = vmatpush1.msra.mxu0 0.0
    %1581 = vmatprep.subr.mxu0 0.0
    %1582 = vmatpush1.msra.mxu0 0.0
    %1583 = vmatprep.subr.mxu0 0.0
    %1584 = vmatpush1.msra.mxu0 0.0
    %1585 = vmatprep.subr.mxu0 0.0
    %1586 = vmatpush1.msra.mxu0 0.0
    %1587 = vmatprep.subr.mxu0 0.0
    %1588 = vmatpush1.msra.mxu0 0.0
    %1589 = vmatprep.subr.mxu0 0.0
    %1590 = vmatpush1.msra.mxu0 0.0
    %1591 = vmatprep.subr.mxu0 0.0
    %1592 = vmatpush1.msra.mxu0 0.0
    %1593 = vmatprep.subr.mxu0 0.0
    %1594 = vmatpush1.msra.mxu0 0.0
    %1595 = vmatprep.subr.mxu0 0.0
    %1596 = vmatpush1.msra.mxu0 0.0
    %1597 = vmatprep.subr.mxu0 0.0
    %1598 = vmatpush1.msra.mxu0 0.0
    %1599 = vmatprep.subr.mxu0 0.0
    %1600 = vmatpush1.msra.mxu0 0.0
    %1601 = vmatprep.mubr.f32.mxu0 0.0
    %1602 = vmatmul.mubr.f32.gmra.mrb[0].mxu0 %v1442
    %v1603 = vpop.f32.mrb[0].mxu0
    %v1604 = vadd.f32 %v1457, %v1603
    %v1605 = vpop.f32.mrb[0].mxu0
    %v1606 = vadd.f32 %v1461, %v1605
    %1607 = vdwg.mxu0
    %v1608 = vxor.u32 %v1533, 2147483648
    %v1609 = vxor.u32 %v1535, 2147483648
    %v1610 = vxor.u32 %v1604, 2147483648
    %v1611 = vmul.f32 %v1608, 1.442695
    %v1612 = vpow.pop %v1611
    %v1613 = vmul.f32 %v1609, 1.442695
    %v1614 = vpow.pop %v1613
    %v1615 = vmul.f32 %v1610, 1.442695
    %v1616 = vpow.pop %v1615
    %v1617 = vadd.f32 %v1612, 1.0
    %v1618 = vadd.f32 %v1614, 1.0
    %v1619 = vadd.f32 %v1616, 1.0
    %v1620 = vrcp.pop %v1617
    %v1621 = vmul.f32 1.0, %v1620
    %v1622 = vrcp.pop %v1618
    %v1623 = vmul.f32 1.0, %v1622
    %v1624 = vrcp.pop %v1619
    %v1625 = vmul.f32 1.0, %v1624
    %v1626 = vtanh.pop %v1606
    %v1627 = vmul.f32 %v1623, %v1440
    %v1628 = vmul.f32 %v1621, %v1626
    %v1629 = vadd.f32 %v1627, %v1628
    %v1630 = vtanh.pop %v1629
    %v1631 = vmul.f32 %v1625, %v1630
    %v1632 = vld [vmem:[%s4] sm:$0x1]
    %v1633 = vmul.f32 %v1631, %v1632
    %vm1634 = vcmask 1040384
    %v1635 = vsel %vm1634, %v1633, 0.0
    %1636 = vadd.xlane.f32.xlu0 %v1635
    %v1637 = vpop.xlane.xlu0 %1636
    %v1638 = vld [vmem:[#allocation3] sm:$0x1]
    %v1639 = vadd.f32 %v1637, %v1638
    %vm1640 = vcmask 0
    %1641 = vst.msk [vmem:[#allocation7] sm:$0x1] %vm1640, %v1639
    // Predicated region
    $region30: #{tpu_custom_call.1} parent=1 // pred_check
      _
    $region31: #{tpu_custom_call.1} parent=1 // pred_check_branch
      %1643 = sbr.rel (0) target = $region33
    $region32: #{tpu_custom_call.1} parent=1 // pred_region
      %s1645 = ssub.s32 16, 16
      %1646 = vsyncadd [#allocation6], %s1645
      %s1648 = sshll.u32 [#allocation7], 4
      %s1649 = int_to_ptr.vmem [resolvable:$true] %s1648
      %1651 = dma.vmem_to_hbm [thread:$0]  %s1649, 16, %s6, [#allocation6]
    $region33: #{tpu_custom_call.1} parent=1 // pred_fallthru
      _
    // Predicated region
    $region34: #{tpu_custom_call.1} parent=1 // pred_check
      _
    $region35: #{tpu_custom_call.1} parent=1 // pred_check_branch
      %1653 = sbr.rel (0) target = $region37
    $region36: #{tpu_custom_call.1} parent=1 // pred_region
      %1654 = dma.done [#allocation6], 16
    $region37: #{tpu_custom_call.1} parent=1 // pred_fallthru
      _
    %1655 = vsyncpa [#allocation5], 1
    %1656 = vsyncpa [#allocation6], 1

</llo_original>
